<compile_context>
chip_gen: v7x
topology: tpu7x:2x2x1
jax: 0.10.0
libtpu: 0.0.40
codegen_flags: <defaults>
</compile_context>

<pallas_src>
import functools

import jax
import jax.numpy as jnp
from jax.experimental import pallas as pl
from jax.experimental.pallas import tpu as pltpu


def _round_up(x, m):
    return ((x + m - 1) // m) * m


# ---------------------------------------------------------------------------
# Pallas kernel: whole seq2seq forward (encoder loop + decoder loop) in VMEM.
# ---------------------------------------------------------------------------
def _seq2seq_kernel(src_ref, fst_ref, w_ref, b_ref, out_ref, *,
                    hidden_dim, offs):
    H = hidden_dim
    S, B, I = src_ref.shape
    F = fst_ref.shape[1]
    T, _, OP = out_ref.shape
    (o_ihe, o_hhe, o_hhd, o_fold, o_fch, o_fcf, o_out) = offs

    # ---- packed weight slab: static 8-aligned row slices (2 DMAs total) ----
    w_ih_e = w_ref[o_ihe:o_ihe + I, :4 * H]
    w_hh_e = w_ref[o_hhe:o_hhe + H, :4 * H]
    w_hh_d = w_ref[o_hhd:o_hhd + H, :4 * H]
    w_fold = w_ref[o_fold:o_fold + H, :4 * H]
    w_fch = w_ref[o_fch:o_fch + H, :H]
    w_fcf = w_ref[o_fcf:o_fcf + F, :H]
    w_out = w_ref[o_out:o_out + H, :OP]

    b_e = b_ref[0:1, :4 * H]
    b_fc = b_ref[1:2, :H]
    b_d = b_ref[2:3, :4 * H]
    b_fold = b_ref[3:4, :4 * H]
    b_out = b_ref[4:5, :OP]

    def cell(gates, c):
        # One full-vreg sigmoid (single EUP push on (B, 4H)) + tanh on g slice.
        # TODO(synk): gate-column permutation (f/i/g at lane offset 0) could
        # shave a few XLU ops per step; skipped to keep the layout simple.
        sig = jax.nn.sigmoid(gates)
        i = sig[:, 0 * H:1 * H]
        f = sig[:, 1 * H:2 * H]
        o = sig[:, 3 * H:4 * H]
        g = jnp.tanh(gates[:, 2 * H:3 * H])
        c_new = f * c + i * g
        h_new = o * jnp.tanh(c_new)
        return h_new, c_new

    # ---- off-critical-path work hoisted ABOVE the recurrences --------------
    xp = (jnp.dot(src_ref[...].reshape(S * B, I), w_ih_e,
                  preferred_element_type=jnp.float32) + b_e).reshape(S, B, 4 * H)
    fst_proj = jnp.dot(fst_ref[...], w_fcf,
                       preferred_element_type=jnp.float32) + b_fc      # (B, H)
    b_d_b = jnp.broadcast_to(b_d, (B, 4 * H))
    b_fold_b = jnp.broadcast_to(b_fold, (B, 4 * H))

    # ---------------- encoder (fully unrolled, 1 MXU push / step) ----------
    h = jnp.zeros((B, H), jnp.float32)
    c = jnp.zeros((B, H), jnp.float32)
    for t in range(S):
        gates = xp[t] + jnp.dot(h, w_hh_e, preferred_element_type=jnp.float32)
        h, c = cell(gates, c)

    # future-state fusion: h = tanh([h ; fst] @ W_fc^T + b_fc) (split matmul,
    # fst half already computed above); decoder cell state = encoder cell.
    h = jnp.tanh(jnp.dot(h, w_fch, preferred_element_type=jnp.float32)
                 + fst_proj)

    # ---------------- decoder (autoregressive, readout folded) -------------
    hs = []
    # step 0: decoder input is zeros -> gates = h @ W_hh_d + b_d
    gates = jnp.dot(h, w_hh_d, preferred_element_type=jnp.float32) + b_d_b
    h, c = cell(gates, c)
    hs.append(h)
    # steps 1..T-1: previous output folded in -> exactly 1 MXU push per step.
    for _ in range(1, T):
        gates = jnp.dot(h, w_fold, preferred_element_type=jnp.float32) + b_fold_b
        h, c = cell(gates, c)
        hs.append(h)

    # Deferred readout: hidden history kept in registers, one batched matmul
    # + one lane-dense (O padded to 128) store, off the recurrence path.
    h_all = jnp.concatenate(hs, axis=0)                        # (T*B, H)
    y = jnp.dot(h_all, w_out, preferred_element_type=jnp.float32) + b_out
    out_ref[...] = y.reshape(T, B, OP)


# ---------------------------------------------------------------------------
# Wrapper: weight prep (transposes, bias folds, readout fold, lane padding),
# operand packing into 2 slabs, maximal batch tiling, layout glue.
# ---------------------------------------------------------------------------
def seq2seq_forward(source_seq, future_state_target, params, target_seq_len):
    """source_seq: (B, S, I) f32, future_state_target: (B, F) f32.
    Returns outputs: (B, target_seq_len, O) f32 (deterministic inference path)."""
    f32 = jnp.float32
    B, S, I = source_seq.shape
    H = params["w_hh_e"].shape[1]
    O = params["w_out"].shape[0]
    F = future_state_target.shape[1]
    T = target_seq_len
    O_PAD = _round_up(O, 128)              # lane-dense output / readout

    # ---- batch tiling: one MAXIMAL tile per grid step ----------------------
    # Grid steps are serial per TensorCore and each one re-runs the whole S+T
    # recurrence, so use as few tiles as possible (grid=(1,) whenever B<=256);
    # ragged B is zero-padded to keep sublane (8) alignment.
    B8 = _round_up(max(B, 1), 8)
    MAX_TILE = 256
    num_tiles = max(1, -(-B8 // MAX_TILE))
    B_TILE = _round_up(-(-B8 // num_tiles), 8)
    B_pad = num_tiles * B_TILE

    src = source_seq.astype(f32)
    fst = future_state_target.astype(f32)
    if B_pad != B:
        src = jnp.pad(src, ((0, B_pad - B), (0, 0), (0, 0)))
        fst = jnp.pad(fst, ((0, B_pad - B), (0, 0)))
    src_tm = jnp.transpose(src, (1, 0, 2))                     # (S, B_pad, I)

    # ---- pre-transposed weights (x @ W), folded LSTM bias pairs ------------
    w_ih_e = params["w_ih_e"].T.astype(f32)                    # (I, 4H)
    w_hh_e = params["w_hh_e"].T.astype(f32)                    # (H, 4H)
    b_e = (params["b_ih_e"] + params["b_hh_e"])[None, :].astype(f32)
    w_fch = params["w_fc"][:, :H].T.astype(f32)                # (H, H)
    w_fcf = params["w_fc"][:, H:].T.astype(f32)                # (F, H)
    b_fc = params["b_fc"][None, :].astype(f32)                 # (1, H)
    w_ih_d = params["w_ih_d"].T.astype(f32)                    # (O, 4H)
    w_hh_d = params["w_hh_d"].T.astype(f32)                    # (H, 4H)
    b_d = (params["b_ih_d"] + params["b_hh_d"])[None, :].astype(f32)
    w_out_t = params["w_out"].T.astype(f32)                    # (H, O)
    b_out = params["b_out"][None, :].astype(f32)               # (1, O)

    # Fold the linear readout into the decoder recurrence (steps t >= 1).
    w_fold = w_out_t @ w_ih_d + w_hh_d                         # (H, 4H)
    b_fold = b_out @ w_ih_d + b_d                              # (1, 4H)

    # Lane-dense padded readout weights for the deferred batched matmul/store.
    w_out_pad = jnp.zeros((H, O_PAD), f32).at[:, :O].set(w_out_t)
    b_out_pad = jnp.zeros((1, O_PAD), f32).at[:, :O].set(b_out)

    # ---- pack all weights / biases into 2 slabs (2 DMAs instead of ~14) ----
    C = max(4 * H, O_PAD)
    mats = [w_ih_e, w_hh_e, w_hh_d, w_fold, w_fch, w_fcf, w_out_pad]
    offs, rows = [], 0
    for m in mats:
        offs.append(rows)
        rows += _round_up(m.shape[0], 8)        # 8-aligned row segments
    w_pack = jnp.zeros((rows, C), f32)
    for off, m in zip(offs, mats):
        w_pack = w_pack.at[off:off + m.shape[0], :m.shape[1]].set(m)

    bias_rows = [b_e, b_fc, b_d, b_fold, b_out_pad]
    b_pack = jnp.zeros((8, C), f32)
    for i, br in enumerate(bias_rows):
        b_pack = b_pack.at[i:i + 1, :br.shape[1]].set(br)

    def whole(a):
        zeros = (0,) * a.ndim
        return pl.BlockSpec(a.shape, lambda b: zeros)

    out_tm = pl.pallas_call(
        functools.partial(_seq2seq_kernel, hidden_dim=H, offs=tuple(offs)),
        out_shape=jax.ShapeDtypeStruct((T, B_pad, O_PAD), f32),
        grid=(num_tiles,),
        in_specs=[pl.BlockSpec((S, B_TILE, I), lambda b: (0, b, 0)),
                  pl.BlockSpec((B_TILE, F), lambda b: (b, 0)),
                  whole(w_pack),
                  whole(b_pack)],
        out_specs=pl.BlockSpec((T, B_TILE, O_PAD), lambda b: (0, b, 0)),
        compiler_params=pltpu.CompilerParams(
            dimension_semantics=("parallel",)),
    )(src_tm, fst, w_pack, b_pack)

    return jnp.transpose(out_tm[:, :B, :O], (1, 0, 2))         # (B, T, O)


# ---------------------------------------------------------------------------
# Pure-JAX reference (unfused math) for a sanity check.
# ---------------------------------------------------------------------------
def seq2seq_reference(source_seq, future_state_target, params, target_seq_len):
    H = params["w_hh_e"].shape[1]
    O = params["w_out"].shape[0]
    B, S, _ = source_seq.shape

    def lstm(x, h, c, w_ih, w_hh, b_ih, b_hh):
        g = x @ w_ih.T + b_ih + h @ w_hh.T + b_hh
        i, f, gg, o = jnp.split(g, 4, axis=-1)
        c = jax.nn.sigmoid(f) * c + jax.nn.sigmoid(i) * jnp.tanh(gg)
        h = jax.nn.sigmoid(o) * jnp.tanh(c)
        return h, c

    h = jnp.zeros((B, H)); c = jnp.zeros((B, H))
    for t in range(S):
        h, c = lstm(source_seq[:, t], h, c, params["w_ih_e"], params["w_hh_e"],
                    params["b_ih_e"], params["b_hh_e"])
    h = jnp.tanh(jnp.concatenate([h, future_state_target], -1)
                 @ params["w_fc"].T + params["b_fc"])
    x = jnp.zeros((B, O))
    outs = []
    for t in range(target_seq_len):
        h, c = lstm(x, h, c, params["w_ih_d"], params["w_hh_d"],
                    params["b_ih_d"], params["b_hh_d"])
        y = h @ params["w_out"].T + params["b_out"]
        outs.append(y)
        x = y
    return jnp.stack(outs, axis=1)


if __name__ == "__main__":
    # Small, deterministic setup.
    B, S, I = 8, 8, 16         # batch, source seq len, encoder input dim
    H, F, O, T = 32, 8, 16, 8  # hidden, future-state dim, output dim, target len

    key = jax.random.PRNGKey(0)
    ks = jax.random.split(key, 14)

    def init(k, shape, scale=0.1):
        return (scale * jax.random.normal(k, shape)).astype(jnp.float32)

    params = {
        "w_ih_e": init(ks[0], (4 * H, I)),
        "w_hh_e": init(ks[1], (4 * H, H)),
        "b_ih_e": init(ks[2], (4 * H,)),
        "b_hh_e": init(ks[3], (4 * H,)),
        "w_fc":   init(ks[4], (H, H + F)),
        "b_fc":   init(ks[5], (H,)),
        "w_ih_d": init(ks[6], (4 * H, O)),
        "w_hh_d": init(ks[7], (4 * H, H)),
        "b_ih_d": init(ks[8], (4 * H,)),
        "b_hh_d": init(ks[9], (4 * H,)),
        "w_out":  init(ks[10], (O, H)),
        "b_out":  init(ks[11], (O,)),
    }

    source_seq = init(ks[12], (B, S, I), scale=1.0)
    future_state_target = init(ks[13], (B, F), scale=1.0)
    # TODO(synk): teacher-forcing branch (host random.random() < ratio with a
    # given target_seq) is host-side RNG control flow; the kernel implements
    # the deterministic target_seq=None path.

    out = seq2seq_forward(source_seq, future_state_target, params, T)
    out = jax.block_until_ready(out)

    ref = seq2seq_reference(source_seq, future_state_target, params, T)
    assert out.shape == (B, T, O)
    err = float(jnp.max(jnp.abs(out - ref)))
    assert err < 1e-4, f"max abs err {err}"

    print("KERNEL_OK")
</pallas_src>

<mosaic_0001>
module attributes {stable_mosaic.version = 11 : i64} {
  func.func @_seq2seq_kernel(%arg0: i32, %arg1: memref<8x8x16xf32, #tpu.memory_space<vmem>>, %arg2: memref<8x8xf32, #tpu.memory_space<vmem>>, %arg3: memref<184x128xf32, #tpu.memory_space<vmem>>, %arg4: memref<8x128xf32, #tpu.memory_space<vmem>>, %arg5: memref<8x8x128xf32, #tpu.memory_space<vmem>>) attributes {dimension_semantics = [#tpu.dimension_semantics<parallel>], iteration_bounds = array<i64: 1>, scalar_prefetch = 0 : i64, scratch_operands = 0 : i64, tpu.core_type = #tpu.core_type<tc>, window_params = [{transform_indices = @transform_0, window_bounds = array<i64: 8, 8, 16>}, {transform_indices = @transform_1, window_bounds = array<i64: 8, 8>}, {pipeline_mode = #tpu.pipeline_mode<synchronous>, transform_indices = @transform_2, window_bounds = array<i64: 184, 128>}, {pipeline_mode = #tpu.pipeline_mode<synchronous>, transform_indices = @transform_3, window_bounds = array<i64: 8, 128>}, {transform_indices = @transform_4, window_bounds = array<i64: 8, 8, 128>}]} {
    %c0 = arith.constant 0 : index
    %c0_0 = arith.constant 0 : index
    %0 = vector.load %arg3[%c0, %c0_0] : memref<184x128xf32, #tpu.memory_space<vmem>>, vector<16x128xf32>
    %c16 = arith.constant 16 : index
    %c0_1 = arith.constant 0 : index
    %1 = vector.load %arg3[%c16, %c0_1] : memref<184x128xf32, #tpu.memory_space<vmem>>, vector<32x128xf32>
    %c48 = arith.constant 48 : index
    %c0_2 = arith.constant 0 : index
    %2 = vector.load %arg3[%c48, %c0_2] : memref<184x128xf32, #tpu.memory_space<vmem>>, vector<32x128xf32>
    %c80 = arith.constant 80 : index
    %c0_3 = arith.constant 0 : index
    %3 = vector.load %arg3[%c80, %c0_3] : memref<184x128xf32, #tpu.memory_space<vmem>>, vector<32x128xf32>
    %c112 = arith.constant 112 : index
    %c0_4 = arith.constant 0 : index
    %4 = vector.load %arg3[%c112, %c0_4] : memref<184x128xf32, #tpu.memory_space<vmem>>, vector<32x32xf32>
    %c144 = arith.constant 144 : index
    %c0_5 = arith.constant 0 : index
    %5 = vector.load %arg3[%c144, %c0_5] : memref<184x128xf32, #tpu.memory_space<vmem>>, vector<8x32xf32>
    %c152 = arith.constant 152 : index
    %c0_6 = arith.constant 0 : index
    %6 = vector.load %arg3[%c152, %c0_6] : memref<184x128xf32, #tpu.memory_space<vmem>>, vector<32x128xf32>
    %c0_7 = arith.constant 0 : index
    %c0_8 = arith.constant 0 : index
    %7 = vector.load %arg4[%c0_7, %c0_8] : memref<8x128xf32, #tpu.memory_space<vmem>>, vector<1x128xf32>
    %c1 = arith.constant 1 : index
    %c0_9 = arith.constant 0 : index
    %8 = vector.load %arg4[%c1, %c0_9] : memref<8x128xf32, #tpu.memory_space<vmem>>, vector<1x32xf32>
    %c2 = arith.constant 2 : index
    %c0_10 = arith.constant 0 : index
    %9 = vector.load %arg4[%c2, %c0_10] : memref<8x128xf32, #tpu.memory_space<vmem>>, vector<1x128xf32>
    %c3 = arith.constant 3 : index
    %c0_11 = arith.constant 0 : index
    %10 = vector.load %arg4[%c3, %c0_11] : memref<8x128xf32, #tpu.memory_space<vmem>>, vector<1x128xf32>
    %c4 = arith.constant 4 : index
    %c0_12 = arith.constant 0 : index
    %11 = vector.load %arg4[%c4, %c0_12] : memref<8x128xf32, #tpu.memory_space<vmem>>, vector<1x128xf32>
    %c0_13 = arith.constant 0 : index
    %c0_14 = arith.constant 0 : index
    %c0_15 = arith.constant 0 : index
    %12 = vector.load %arg1[%c0_13, %c0_14, %c0_15] : memref<8x8x16xf32, #tpu.memory_space<vmem>>, vector<8x8x16xf32>
    %13 = vector.shape_cast %12 : vector<8x8x16xf32> to vector<64x16xf32>
    %cst = arith.constant dense<0.000000e+00> : vector<64x128xf32>
    %14 = tpu.matmul %13, %0, %cst {dimension_numbers = #tpu.dot_dimension_numbers<[1], [0], [0], [1], [0, 0, 1, 1], [], []>} : vector<64x16xf32>, vector<16x128xf32>, vector<64x128xf32> -> vector<64x128xf32>
    %15 = vector.broadcast %7 : vector<1x128xf32> to vector<64x128xf32>
    %16 = arith.addf %14, %15 : vector<64x128xf32>
    %17 = vector.shape_cast %16 : vector<64x128xf32> to vector<8x8x128xf32>
    %c0_16 = arith.constant 0 : index
    %c0_17 = arith.constant 0 : index
    %18 = vector.load %arg2[%c0_16, %c0_17] : memref<8x8xf32, #tpu.memory_space<vmem>>, vector<8x8xf32>
    %cst_18 = arith.constant dense<0.000000e+00> : vector<8x32xf32>
    %19 = tpu.matmul %18, %5, %cst_18 {dimension_numbers = #tpu.dot_dimension_numbers<[1], [0], [0], [1], [0, 0, 1, 1], [], []>} : vector<8x8xf32>, vector<8x32xf32>, vector<8x32xf32> -> vector<8x32xf32>
    %20 = vector.broadcast %8 : vector<1x32xf32> to vector<8x32xf32>
    %21 = arith.addf %19, %20 : vector<8x32xf32>
    %22 = vector.shape_cast %9 : vector<1x128xf32> to vector<1x128xf32>
    %23 = vector.broadcast %22 : vector<1x128xf32> to vector<8x128xf32>
    %24 = vector.shape_cast %10 : vector<1x128xf32> to vector<1x128xf32>
    %25 = vector.broadcast %24 : vector<1x128xf32> to vector<8x128xf32>
    %cst_19 = arith.constant 0.000000e+00 : f32
    %26 = vector.broadcast %cst_19 : f32 to vector<8x32xf32>
    %cst_20 = arith.constant 0.000000e+00 : f32
    %27 = vector.broadcast %cst_20 : f32 to vector<8x32xf32>
    %28 = vector.extract_strided_slice %17 {offsets = [0, 0, 0], sizes = [1, 8, 128], strides = [1, 1, 1]} : vector<8x8x128xf32> to vector<1x8x128xf32>
    %29 = vector.shape_cast %28 : vector<1x8x128xf32> to vector<8x128xf32>
    %cst_21 = arith.constant dense<0.000000e+00> : vector<8x128xf32>
    %30 = tpu.matmul %26, %1, %cst_21 {dimension_numbers = #tpu.dot_dimension_numbers<[1], [0], [0], [1], [0, 0, 1, 1], [], []>} : vector<8x32xf32>, vector<32x128xf32>, vector<8x128xf32> -> vector<8x128xf32>
    %31 = arith.addf %29, %30 : vector<8x128xf32>
    %32 = arith.negf %31 : vector<8x128xf32>
    %33 = math.exp %32 : vector<8x128xf32>
    %cst_22 = arith.constant 1.000000e+00 : f32
    %34 = vector.broadcast %cst_22 : f32 to vector<8x128xf32>
    %35 = arith.addf %34, %33 : vector<8x128xf32>
    %36 = arith.divf %34, %35 : vector<8x128xf32>
    %37 = vector.extract_strided_slice %36 {offsets = [0, 0], sizes = [8, 32], strides = [1, 1]} : vector<8x128xf32> to vector<8x32xf32>
    %38 = vector.extract_strided_slice %36 {offsets = [0, 32], sizes = [8, 32], strides = [1, 1]} : vector<8x128xf32> to vector<8x32xf32>
    %39 = vector.extract_strided_slice %36 {offsets = [0, 96], sizes = [8, 32], strides = [1, 1]} : vector<8x128xf32> to vector<8x32xf32>
    %40 = vector.extract_strided_slice %31 {offsets = [0, 64], sizes = [8, 32], strides = [1, 1]} : vector<8x128xf32> to vector<8x32xf32>
    %41 = math.tanh %40 : vector<8x32xf32>
    %42 = arith.mulf %38, %27 : vector<8x32xf32>
    %43 = arith.mulf %37, %41 : vector<8x32xf32>
    %44 = arith.addf %42, %43 : vector<8x32xf32>
    %45 = math.tanh %44 : vector<8x32xf32>
    %46 = arith.mulf %39, %45 : vector<8x32xf32>
    %47 = vector.extract_strided_slice %17 {offsets = [1, 0, 0], sizes = [1, 8, 128], strides = [1, 1, 1]} : vector<8x8x128xf32> to vector<1x8x128xf32>
    %48 = vector.shape_cast %47 : vector<1x8x128xf32> to vector<8x128xf32>
    %cst_23 = arith.constant dense<0.000000e+00> : vector<8x128xf32>
    %49 = tpu.matmul %46, %1, %cst_23 {dimension_numbers = #tpu.dot_dimension_numbers<[1], [0], [0], [1], [0, 0, 1, 1], [], []>} : vector<8x32xf32>, vector<32x128xf32>, vector<8x128xf32> -> vector<8x128xf32>
    %50 = arith.addf %48, %49 : vector<8x128xf32>
    %51 = arith.negf %50 : vector<8x128xf32>
    %52 = math.exp %51 : vector<8x128xf32>
    %cst_24 = arith.constant 1.000000e+00 : f32
    %53 = vector.broadcast %cst_24 : f32 to vector<8x128xf32>
    %54 = arith.addf %53, %52 : vector<8x128xf32>
    %55 = arith.divf %53, %54 : vector<8x128xf32>
    %56 = vector.extract_strided_slice %55 {offsets = [0, 0], sizes = [8, 32], strides = [1, 1]} : vector<8x128xf32> to vector<8x32xf32>
    %57 = vector.extract_strided_slice %55 {offsets = [0, 32], sizes = [8, 32], strides = [1, 1]} : vector<8x128xf32> to vector<8x32xf32>
    %58 = vector.extract_strided_slice %55 {offsets = [0, 96], sizes = [8, 32], strides = [1, 1]} : vector<8x128xf32> to vector<8x32xf32>
    %59 = vector.extract_strided_slice %50 {offsets = [0, 64], sizes = [8, 32], strides = [1, 1]} : vector<8x128xf32> to vector<8x32xf32>
    %60 = math.tanh %59 : vector<8x32xf32>
    %61 = arith.mulf %57, %44 : vector<8x32xf32>
    %62 = arith.mulf %56, %60 : vector<8x32xf32>
    %63 = arith.addf %61, %62 : vector<8x32xf32>
    %64 = math.tanh %63 : vector<8x32xf32>
    %65 = arith.mulf %58, %64 : vector<8x32xf32>
    %66 = vector.extract_strided_slice %17 {offsets = [2, 0, 0], sizes = [1, 8, 128], strides = [1, 1, 1]} : vector<8x8x128xf32> to vector<1x8x128xf32>
    %67 = vector.shape_cast %66 : vector<1x8x128xf32> to vector<8x128xf32>
    %cst_25 = arith.constant dense<0.000000e+00> : vector<8x128xf32>
    %68 = tpu.matmul %65, %1, %cst_25 {dimension_numbers = #tpu.dot_dimension_numbers<[1], [0], [0], [1], [0, 0, 1, 1], [], []>} : vector<8x32xf32>, vector<32x128xf32>, vector<8x128xf32> -> vector<8x128xf32>
    %69 = arith.addf %67, %68 : vector<8x128xf32>
    %70 = arith.negf %69 : vector<8x128xf32>
    %71 = math.exp %70 : vector<8x128xf32>
    %cst_26 = arith.constant 1.000000e+00 : f32
    %72 = vector.broadcast %cst_26 : f32 to vector<8x128xf32>
    %73 = arith.addf %72, %71 : vector<8x128xf32>
    %74 = arith.divf %72, %73 : vector<8x128xf32>
    %75 = vector.extract_strided_slice %74 {offsets = [0, 0], sizes = [8, 32], strides = [1, 1]} : vector<8x128xf32> to vector<8x32xf32>
    %76 = vector.extract_strided_slice %74 {offsets = [0, 32], sizes = [8, 32], strides = [1, 1]} : vector<8x128xf32> to vector<8x32xf32>
    %77 = vector.extract_strided_slice %74 {offsets = [0, 96], sizes = [8, 32], strides = [1, 1]} : vector<8x128xf32> to vector<8x32xf32>
    %78 = vector.extract_strided_slice %69 {offsets = [0, 64], sizes = [8, 32], strides = [1, 1]} : vector<8x128xf32> to vector<8x32xf32>
    %79 = math.tanh %78 : vector<8x32xf32>
    %80 = arith.mulf %76, %63 : vector<8x32xf32>
    %81 = arith.mulf %75, %79 : vector<8x32xf32>
    %82 = arith.addf %80, %81 : vector<8x32xf32>
    %83 = math.tanh %82 : vector<8x32xf32>
    %84 = arith.mulf %77, %83 : vector<8x32xf32>
    %85 = vector.extract_strided_slice %17 {offsets = [3, 0, 0], sizes = [1, 8, 128], strides = [1, 1, 1]} : vector<8x8x128xf32> to vector<1x8x128xf32>
    %86 = vector.shape_cast %85 : vector<1x8x128xf32> to vector<8x128xf32>
    %cst_27 = arith.constant dense<0.000000e+00> : vector<8x128xf32>
    %87 = tpu.matmul %84, %1, %cst_27 {dimension_numbers = #tpu.dot_dimension_numbers<[1], [0], [0], [1], [0, 0, 1, 1], [], []>} : vector<8x32xf32>, vector<32x128xf32>, vector<8x128xf32> -> vector<8x128xf32>
    %88 = arith.addf %86, %87 : vector<8x128xf32>
    %89 = arith.negf %88 : vector<8x128xf32>
    %90 = math.exp %89 : vector<8x128xf32>
    %cst_28 = arith.constant 1.000000e+00 : f32
    %91 = vector.broadcast %cst_28 : f32 to vector<8x128xf32>
    %92 = arith.addf %91, %90 : vector<8x128xf32>
    %93 = arith.divf %91, %92 : vector<8x128xf32>
    %94 = vector.extract_strided_slice %93 {offsets = [0, 0], sizes = [8, 32], strides = [1, 1]} : vector<8x128xf32> to vector<8x32xf32>
    %95 = vector.extract_strided_slice %93 {offsets = [0, 32], sizes = [8, 32], strides = [1, 1]} : vector<8x128xf32> to vector<8x32xf32>
    %96 = vector.extract_strided_slice %93 {offsets = [0, 96], sizes = [8, 32], strides = [1, 1]} : vector<8x128xf32> to vector<8x32xf32>
    %97 = vector.extract_strided_slice %88 {offsets = [0, 64], sizes = [8, 32], strides = [1, 1]} : vector<8x128xf32> to vector<8x32xf32>
    %98 = math.tanh %97 : vector<8x32xf32>
    %99 = arith.mulf %95, %82 : vector<8x32xf32>
    %100 = arith.mulf %94, %98 : vector<8x32xf32>
    %101 = arith.addf %99, %100 : vector<8x32xf32>
    %102 = math.tanh %101 : vector<8x32xf32>
    %103 = arith.mulf %96, %102 : vector<8x32xf32>
    %104 = vector.extract_strided_slice %17 {offsets = [4, 0, 0], sizes = [1, 8, 128], strides = [1, 1, 1]} : vector<8x8x128xf32> to vector<1x8x128xf32>
    %105 = vector.shape_cast %104 : vector<1x8x128xf32> to vector<8x128xf32>
    %cst_29 = arith.constant dense<0.000000e+00> : vector<8x128xf32>
    %106 = tpu.matmul %103, %1, %cst_29 {dimension_numbers = #tpu.dot_dimension_numbers<[1], [0], [0], [1], [0, 0, 1, 1], [], []>} : vector<8x32xf32>, vector<32x128xf32>, vector<8x128xf32> -> vector<8x128xf32>
    %107 = arith.addf %105, %106 : vector<8x128xf32>
    %108 = arith.negf %107 : vector<8x128xf32>
    %109 = math.exp %108 : vector<8x128xf32>
    %cst_30 = arith.constant 1.000000e+00 : f32
    %110 = vector.broadcast %cst_30 : f32 to vector<8x128xf32>
    %111 = arith.addf %110, %109 : vector<8x128xf32>
    %112 = arith.divf %110, %111 : vector<8x128xf32>
    %113 = vector.extract_strided_slice %112 {offsets = [0, 0], sizes = [8, 32], strides = [1, 1]} : vector<8x128xf32> to vector<8x32xf32>
    %114 = vector.extract_strided_slice %112 {offsets = [0, 32], sizes = [8, 32], strides = [1, 1]} : vector<8x128xf32> to vector<8x32xf32>
    %115 = vector.extract_strided_slice %112 {offsets = [0, 96], sizes = [8, 32], strides = [1, 1]} : vector<8x128xf32> to vector<8x32xf32>
    %116 = vector.extract_strided_slice %107 {offsets = [0, 64], sizes = [8, 32], strides = [1, 1]} : vector<8x128xf32> to vector<8x32xf32>
    %117 = math.tanh %116 : vector<8x32xf32>
    %118 = arith.mulf %114, %101 : vector<8x32xf32>
    %119 = arith.mulf %113, %117 : vector<8x32xf32>
    %120 = arith.addf %118, %119 : vector<8x32xf32>
    %121 = math.tanh %120 : vector<8x32xf32>
    %122 = arith.mulf %115, %121 : vector<8x32xf32>
    %123 = vector.extract_strided_slice %17 {offsets = [5, 0, 0], sizes = [1, 8, 128], strides = [1, 1, 1]} : vector<8x8x128xf32> to vector<1x8x128xf32>
    %124 = vector.shape_cast %123 : vector<1x8x128xf32> to vector<8x128xf32>
    %cst_31 = arith.constant dense<0.000000e+00> : vector<8x128xf32>
    %125 = tpu.matmul %122, %1, %cst_31 {dimension_numbers = #tpu.dot_dimension_numbers<[1], [0], [0], [1], [0, 0, 1, 1], [], []>} : vector<8x32xf32>, vector<32x128xf32>, vector<8x128xf32> -> vector<8x128xf32>
    %126 = arith.addf %124, %125 : vector<8x128xf32>
    %127 = arith.negf %126 : vector<8x128xf32>
    %128 = math.exp %127 : vector<8x128xf32>
    %cst_32 = arith.constant 1.000000e+00 : f32
    %129 = vector.broadcast %cst_32 : f32 to vector<8x128xf32>
    %130 = arith.addf %129, %128 : vector<8x128xf32>
    %131 = arith.divf %129, %130 : vector<8x128xf32>
    %132 = vector.extract_strided_slice %131 {offsets = [0, 0], sizes = [8, 32], strides = [1, 1]} : vector<8x128xf32> to vector<8x32xf32>
    %133 = vector.extract_strided_slice %131 {offsets = [0, 32], sizes = [8, 32], strides = [1, 1]} : vector<8x128xf32> to vector<8x32xf32>
    %134 = vector.extract_strided_slice %131 {offsets = [0, 96], sizes = [8, 32], strides = [1, 1]} : vector<8x128xf32> to vector<8x32xf32>
    %135 = vector.extract_strided_slice %126 {offsets = [0, 64], sizes = [8, 32], strides = [1, 1]} : vector<8x128xf32> to vector<8x32xf32>
    %136 = math.tanh %135 : vector<8x32xf32>
    %137 = arith.mulf %133, %120 : vector<8x32xf32>
    %138 = arith.mulf %132, %136 : vector<8x32xf32>
    %139 = arith.addf %137, %138 : vector<8x32xf32>
    %140 = math.tanh %139 : vector<8x32xf32>
    %141 = arith.mulf %134, %140 : vector<8x32xf32>
    %142 = vector.extract_strided_slice %17 {offsets = [6, 0, 0], sizes = [1, 8, 128], strides = [1, 1, 1]} : vector<8x8x128xf32> to vector<1x8x128xf32>
    %143 = vector.shape_cast %142 : vector<1x8x128xf32> to vector<8x128xf32>
    %cst_33 = arith.constant dense<0.000000e+00> : vector<8x128xf32>
    %144 = tpu.matmul %141, %1, %cst_33 {dimension_numbers = #tpu.dot_dimension_numbers<[1], [0], [0], [1], [0, 0, 1, 1], [], []>} : vector<8x32xf32>, vector<32x128xf32>, vector<8x128xf32> -> vector<8x128xf32>
    %145 = arith.addf %143, %144 : vector<8x128xf32>
    %146 = arith.negf %145 : vector<8x128xf32>
    %147 = math.exp %146 : vector<8x128xf32>
    %cst_34 = arith.constant 1.000000e+00 : f32
    %148 = vector.broadcast %cst_34 : f32 to vector<8x128xf32>
    %149 = arith.addf %148, %147 : vector<8x128xf32>
    %150 = arith.divf %148, %149 : vector<8x128xf32>
    %151 = vector.extract_strided_slice %150 {offsets = [0, 0], sizes = [8, 32], strides = [1, 1]} : vector<8x128xf32> to vector<8x32xf32>
    %152 = vector.extract_strided_slice %150 {offsets = [0, 32], sizes = [8, 32], strides = [1, 1]} : vector<8x128xf32> to vector<8x32xf32>
    %153 = vector.extract_strided_slice %150 {offsets = [0, 96], sizes = [8, 32], strides = [1, 1]} : vector<8x128xf32> to vector<8x32xf32>
    %154 = vector.extract_strided_slice %145 {offsets = [0, 64], sizes = [8, 32], strides = [1, 1]} : vector<8x128xf32> to vector<8x32xf32>
    %155 = math.tanh %154 : vector<8x32xf32>
    %156 = arith.mulf %152, %139 : vector<8x32xf32>
    %157 = arith.mulf %151, %155 : vector<8x32xf32>
    %158 = arith.addf %156, %157 : vector<8x32xf32>
    %159 = math.tanh %158 : vector<8x32xf32>
    %160 = arith.mulf %153, %159 : vector<8x32xf32>
    %161 = vector.extract_strided_slice %17 {offsets = [7, 0, 0], sizes = [1, 8, 128], strides = [1, 1, 1]} : vector<8x8x128xf32> to vector<1x8x128xf32>
    %162 = vector.shape_cast %161 : vector<1x8x128xf32> to vector<8x128xf32>
    %cst_35 = arith.constant dense<0.000000e+00> : vector<8x128xf32>
    %163 = tpu.matmul %160, %1, %cst_35 {dimension_numbers = #tpu.dot_dimension_numbers<[1], [0], [0], [1], [0, 0, 1, 1], [], []>} : vector<8x32xf32>, vector<32x128xf32>, vector<8x128xf32> -> vector<8x128xf32>
    %164 = arith.addf %162, %163 : vector<8x128xf32>
    %165 = arith.negf %164 : vector<8x128xf32>
    %166 = math.exp %165 : vector<8x128xf32>
    %cst_36 = arith.constant 1.000000e+00 : f32
    %167 = vector.broadcast %cst_36 : f32 to vector<8x128xf32>
    %168 = arith.addf %167, %166 : vector<8x128xf32>
    %169 = arith.divf %167, %168 : vector<8x128xf32>
    %170 = vector.extract_strided_slice %169 {offsets = [0, 0], sizes = [8, 32], strides = [1, 1]} : vector<8x128xf32> to vector<8x32xf32>
    %171 = vector.extract_strided_slice %169 {offsets = [0, 32], sizes = [8, 32], strides = [1, 1]} : vector<8x128xf32> to vector<8x32xf32>
    %172 = vector.extract_strided_slice %169 {offsets = [0, 96], sizes = [8, 32], strides = [1, 1]} : vector<8x128xf32> to vector<8x32xf32>
    %173 = vector.extract_strided_slice %164 {offsets = [0, 64], sizes = [8, 32], strides = [1, 1]} : vector<8x128xf32> to vector<8x32xf32>
    %174 = math.tanh %173 : vector<8x32xf32>
    %175 = arith.mulf %171, %158 : vector<8x32xf32>
    %176 = arith.mulf %170, %174 : vector<8x32xf32>
    %177 = arith.addf %175, %176 : vector<8x32xf32>
    %178 = math.tanh %177 : vector<8x32xf32>
    %179 = arith.mulf %172, %178 : vector<8x32xf32>
    %cst_37 = arith.constant dense<0.000000e+00> : vector<8x32xf32>
    %180 = tpu.matmul %179, %4, %cst_37 {dimension_numbers = #tpu.dot_dimension_numbers<[1], [0], [0], [1], [0, 0, 1, 1], [], []>} : vector<8x32xf32>, vector<32x32xf32>, vector<8x32xf32> -> vector<8x32xf32>
    %181 = arith.addf %180, %21 : vector<8x32xf32>
    %182 = math.tanh %181 : vector<8x32xf32>
    %cst_38 = arith.constant dense<0.000000e+00> : vector<8x128xf32>
    %183 = tpu.matmul %182, %2, %cst_38 {dimension_numbers = #tpu.dot_dimension_numbers<[1], [0], [0], [1], [0, 0, 1, 1], [], []>} : vector<8x32xf32>, vector<32x128xf32>, vector<8x128xf32> -> vector<8x128xf32>
    %184 = arith.addf %183, %23 : vector<8x128xf32>
    %185 = arith.negf %184 : vector<8x128xf32>
    %186 = math.exp %185 : vector<8x128xf32>
    %cst_39 = arith.constant 1.000000e+00 : f32
    %187 = vector.broadcast %cst_39 : f32 to vector<8x128xf32>
    %188 = arith.addf %187, %186 : vector<8x128xf32>
    %189 = arith.divf %187, %188 : vector<8x128xf32>
    %190 = vector.extract_strided_slice %189 {offsets = [0, 0], sizes = [8, 32], strides = [1, 1]} : vector<8x128xf32> to vector<8x32xf32>
    %191 = vector.extract_strided_slice %189 {offsets = [0, 32], sizes = [8, 32], strides = [1, 1]} : vector<8x128xf32> to vector<8x32xf32>
    %192 = vector.extract_strided_slice %189 {offsets = [0, 96], sizes = [8, 32], strides = [1, 1]} : vector<8x128xf32> to vector<8x32xf32>
    %193 = vector.extract_strided_slice %184 {offsets = [0, 64], sizes = [8, 32], strides = [1, 1]} : vector<8x128xf32> to vector<8x32xf32>
    %194 = math.tanh %193 : vector<8x32xf32>
    %195 = arith.mulf %191, %177 : vector<8x32xf32>
    %196 = arith.mulf %190, %194 : vector<8x32xf32>
    %197 = arith.addf %195, %196 : vector<8x32xf32>
    %198 = math.tanh %197 : vector<8x32xf32>
    %199 = arith.mulf %192, %198 : vector<8x32xf32>
    %cst_40 = arith.constant dense<0.000000e+00> : vector<8x128xf32>
    %200 = tpu.matmul %199, %3, %cst_40 {dimension_numbers = #tpu.dot_dimension_numbers<[1], [0], [0], [1], [0, 0, 1, 1], [], []>} : vector<8x32xf32>, vector<32x128xf32>, vector<8x128xf32> -> vector<8x128xf32>
    %201 = arith.addf %200, %25 : vector<8x128xf32>
    %202 = arith.negf %201 : vector<8x128xf32>
    %203 = math.exp %202 : vector<8x128xf32>
    %cst_41 = arith.constant 1.000000e+00 : f32
    %204 = vector.broadcast %cst_41 : f32 to vector<8x128xf32>
    %205 = arith.addf %204, %203 : vector<8x128xf32>
    %206 = arith.divf %204, %205 : vector<8x128xf32>
    %207 = vector.extract_strided_slice %206 {offsets = [0, 0], sizes = [8, 32], strides = [1, 1]} : vector<8x128xf32> to vector<8x32xf32>
    %208 = vector.extract_strided_slice %206 {offsets = [0, 32], sizes = [8, 32], strides = [1, 1]} : vector<8x128xf32> to vector<8x32xf32>
    %209 = vector.extract_strided_slice %206 {offsets = [0, 96], sizes = [8, 32], strides = [1, 1]} : vector<8x128xf32> to vector<8x32xf32>
    %210 = vector.extract_strided_slice %201 {offsets = [0, 64], sizes = [8, 32], strides = [1, 1]} : vector<8x128xf32> to vector<8x32xf32>
    %211 = math.tanh %210 : vector<8x32xf32>
    %212 = arith.mulf %208, %197 : vector<8x32xf32>
    %213 = arith.mulf %207, %211 : vector<8x32xf32>
    %214 = arith.addf %212, %213 : vector<8x32xf32>
    %215 = math.tanh %214 : vector<8x32xf32>
    %216 = arith.mulf %209, %215 : vector<8x32xf32>
    %cst_42 = arith.constant dense<0.000000e+00> : vector<8x128xf32>
    %217 = tpu.matmul %216, %3, %cst_42 {dimension_numbers = #tpu.dot_dimension_numbers<[1], [0], [0], [1], [0, 0, 1, 1], [], []>} : vector<8x32xf32>, vector<32x128xf32>, vector<8x128xf32> -> vector<8x128xf32>
    %218 = arith.addf %217, %25 : vector<8x128xf32>
    %219 = arith.negf %218 : vector<8x128xf32>
    %220 = math.exp %219 : vector<8x128xf32>
    %cst_43 = arith.constant 1.000000e+00 : f32
    %221 = vector.broadcast %cst_43 : f32 to vector<8x128xf32>
    %222 = arith.addf %221, %220 : vector<8x128xf32>
    %223 = arith.divf %221, %222 : vector<8x128xf32>
    %224 = vector.extract_strided_slice %223 {offsets = [0, 0], sizes = [8, 32], strides = [1, 1]} : vector<8x128xf32> to vector<8x32xf32>
    %225 = vector.extract_strided_slice %223 {offsets = [0, 32], sizes = [8, 32], strides = [1, 1]} : vector<8x128xf32> to vector<8x32xf32>
    %226 = vector.extract_strided_slice %223 {offsets = [0, 96], sizes = [8, 32], strides = [1, 1]} : vector<8x128xf32> to vector<8x32xf32>
    %227 = vector.extract_strided_slice %218 {offsets = [0, 64], sizes = [8, 32], strides = [1, 1]} : vector<8x128xf32> to vector<8x32xf32>
    %228 = math.tanh %227 : vector<8x32xf32>
    %229 = arith.mulf %225, %214 : vector<8x32xf32>
    %230 = arith.mulf %224, %228 : vector<8x32xf32>
    %231 = arith.addf %229, %230 : vector<8x32xf32>
    %232 = math.tanh %231 : vector<8x32xf32>
    %233 = arith.mulf %226, %232 : vector<8x32xf32>
    %cst_44 = arith.constant dense<0.000000e+00> : vector<8x128xf32>
    %234 = tpu.matmul %233, %3, %cst_44 {dimension_numbers = #tpu.dot_dimension_numbers<[1], [0], [0], [1], [0, 0, 1, 1], [], []>} : vector<8x32xf32>, vector<32x128xf32>, vector<8x128xf32> -> vector<8x128xf32>
    %235 = arith.addf %234, %25 : vector<8x128xf32>
    %236 = arith.negf %235 : vector<8x128xf32>
    %237 = math.exp %236 : vector<8x128xf32>
    %cst_45 = arith.constant 1.000000e+00 : f32
    %238 = vector.broadcast %cst_45 : f32 to vector<8x128xf32>
    %239 = arith.addf %238, %237 : vector<8x128xf32>
    %240 = arith.divf %238, %239 : vector<8x128xf32>
    %241 = vector.extract_strided_slice %240 {offsets = [0, 0], sizes = [8, 32], strides = [1, 1]} : vector<8x128xf32> to vector<8x32xf32>
    %242 = vector.extract_strided_slice %240 {offsets = [0, 32], sizes = [8, 32], strides = [1, 1]} : vector<8x128xf32> to vector<8x32xf32>
    %243 = vector.extract_strided_slice %240 {offsets = [0, 96], sizes = [8, 32], strides = [1, 1]} : vector<8x128xf32> to vector<8x32xf32>
    %244 = vector.extract_strided_slice %235 {offsets = [0, 64], sizes = [8, 32], strides = [1, 1]} : vector<8x128xf32> to vector<8x32xf32>
    %245 = math.tanh %244 : vector<8x32xf32>
    %246 = arith.mulf %242, %231 : vector<8x32xf32>
    %247 = arith.mulf %241, %245 : vector<8x32xf32>
    %248 = arith.addf %246, %247 : vector<8x32xf32>
    %249 = math.tanh %248 : vector<8x32xf32>
    %250 = arith.mulf %243, %249 : vector<8x32xf32>
    %cst_46 = arith.constant dense<0.000000e+00> : vector<8x128xf32>
    %251 = tpu.matmul %250, %3, %cst_46 {dimension_numbers = #tpu.dot_dimension_numbers<[1], [0], [0], [1], [0, 0, 1, 1], [], []>} : vector<8x32xf32>, vector<32x128xf32>, vector<8x128xf32> -> vector<8x128xf32>
    %252 = arith.addf %251, %25 : vector<8x128xf32>
    %253 = arith.negf %252 : vector<8x128xf32>
    %254 = math.exp %253 : vector<8x128xf32>
    %cst_47 = arith.constant 1.000000e+00 : f32
    %255 = vector.broadcast %cst_47 : f32 to vector<8x128xf32>
    %256 = arith.addf %255, %254 : vector<8x128xf32>
    %257 = arith.divf %255, %256 : vector<8x128xf32>
    %258 = vector.extract_strided_slice %257 {offsets = [0, 0], sizes = [8, 32], strides = [1, 1]} : vector<8x128xf32> to vector<8x32xf32>
    %259 = vector.extract_strided_slice %257 {offsets = [0, 32], sizes = [8, 32], strides = [1, 1]} : vector<8x128xf32> to vector<8x32xf32>
    %260 = vector.extract_strided_slice %257 {offsets = [0, 96], sizes = [8, 32], strides = [1, 1]} : vector<8x128xf32> to vector<8x32xf32>
    %261 = vector.extract_strided_slice %252 {offsets = [0, 64], sizes = [8, 32], strides = [1, 1]} : vector<8x128xf32> to vector<8x32xf32>
    %262 = math.tanh %261 : vector<8x32xf32>
    %263 = arith.mulf %259, %248 : vector<8x32xf32>
    %264 = arith.mulf %258, %262 : vector<8x32xf32>
    %265 = arith.addf %263, %264 : vector<8x32xf32>
    %266 = math.tanh %265 : vector<8x32xf32>
    %267 = arith.mulf %260, %266 : vector<8x32xf32>
    %cst_48 = arith.constant dense<0.000000e+00> : vector<8x128xf32>
    %268 = tpu.matmul %267, %3, %cst_48 {dimension_numbers = #tpu.dot_dimension_numbers<[1], [0], [0], [1], [0, 0, 1, 1], [], []>} : vector<8x32xf32>, vector<32x128xf32>, vector<8x128xf32> -> vector<8x128xf32>
    %269 = arith.addf %268, %25 : vector<8x128xf32>
    %270 = arith.negf %269 : vector<8x128xf32>
    %271 = math.exp %270 : vector<8x128xf32>
    %cst_49 = arith.constant 1.000000e+00 : f32
    %272 = vector.broadcast %cst_49 : f32 to vector<8x128xf32>
    %273 = arith.addf %272, %271 : vector<8x128xf32>
    %274 = arith.divf %272, %273 : vector<8x128xf32>
    %275 = vector.extract_strided_slice %274 {offsets = [0, 0], sizes = [8, 32], strides = [1, 1]} : vector<8x128xf32> to vector<8x32xf32>
    %276 = vector.extract_strided_slice %274 {offsets = [0, 32], sizes = [8, 32], strides = [1, 1]} : vector<8x128xf32> to vector<8x32xf32>
    %277 = vector.extract_strided_slice %274 {offsets = [0, 96], sizes = [8, 32], strides = [1, 1]} : vector<8x128xf32> to vector<8x32xf32>
    %278 = vector.extract_strided_slice %269 {offsets = [0, 64], sizes = [8, 32], strides = [1, 1]} : vector<8x128xf32> to vector<8x32xf32>
    %279 = math.tanh %278 : vector<8x32xf32>
    %280 = arith.mulf %276, %265 : vector<8x32xf32>
    %281 = arith.mulf %275, %279 : vector<8x32xf32>
    %282 = arith.addf %280, %281 : vector<8x32xf32>
    %283 = math.tanh %282 : vector<8x32xf32>
    %284 = arith.mulf %277, %283 : vector<8x32xf32>
    %cst_50 = arith.constant dense<0.000000e+00> : vector<8x128xf32>
    %285 = tpu.matmul %284, %3, %cst_50 {dimension_numbers = #tpu.dot_dimension_numbers<[1], [0], [0], [1], [0, 0, 1, 1], [], []>} : vector<8x32xf32>, vector<32x128xf32>, vector<8x128xf32> -> vector<8x128xf32>
    %286 = arith.addf %285, %25 : vector<8x128xf32>
    %287 = arith.negf %286 : vector<8x128xf32>
    %288 = math.exp %287 : vector<8x128xf32>
    %cst_51 = arith.constant 1.000000e+00 : f32
    %289 = vector.broadcast %cst_51 : f32 to vector<8x128xf32>
    %290 = arith.addf %289, %288 : vector<8x128xf32>
    %291 = arith.divf %289, %290 : vector<8x128xf32>
    %292 = vector.extract_strided_slice %291 {offsets = [0, 0], sizes = [8, 32], strides = [1, 1]} : vector<8x128xf32> to vector<8x32xf32>
    %293 = vector.extract_strided_slice %291 {offsets = [0, 32], sizes = [8, 32], strides = [1, 1]} : vector<8x128xf32> to vector<8x32xf32>
    %294 = vector.extract_strided_slice %291 {offsets = [0, 96], sizes = [8, 32], strides = [1, 1]} : vector<8x128xf32> to vector<8x32xf32>
    %295 = vector.extract_strided_slice %286 {offsets = [0, 64], sizes = [8, 32], strides = [1, 1]} : vector<8x128xf32> to vector<8x32xf32>
    %296 = math.tanh %295 : vector<8x32xf32>
    %297 = arith.mulf %293, %282 : vector<8x32xf32>
    %298 = arith.mulf %292, %296 : vector<8x32xf32>
    %299 = arith.addf %297, %298 : vector<8x32xf32>
    %300 = math.tanh %299 : vector<8x32xf32>
    %301 = arith.mulf %294, %300 : vector<8x32xf32>
    %cst_52 = arith.constant dense<0.000000e+00> : vector<8x128xf32>
    %302 = tpu.matmul %301, %3, %cst_52 {dimension_numbers = #tpu.dot_dimension_numbers<[1], [0], [0], [1], [0, 0, 1, 1], [], []>} : vector<8x32xf32>, vector<32x128xf32>, vector<8x128xf32> -> vector<8x128xf32>
    %303 = arith.addf %302, %25 : vector<8x128xf32>
    %304 = arith.negf %303 : vector<8x128xf32>
    %305 = math.exp %304 : vector<8x128xf32>
    %cst_53 = arith.constant 1.000000e+00 : f32
    %306 = vector.broadcast %cst_53 : f32 to vector<8x128xf32>
    %307 = arith.addf %306, %305 : vector<8x128xf32>
    %308 = arith.divf %306, %307 : vector<8x128xf32>
    %309 = vector.extract_strided_slice %308 {offsets = [0, 0], sizes = [8, 32], strides = [1, 1]} : vector<8x128xf32> to vector<8x32xf32>
    %310 = vector.extract_strided_slice %308 {offsets = [0, 32], sizes = [8, 32], strides = [1, 1]} : vector<8x128xf32> to vector<8x32xf32>
    %311 = vector.extract_strided_slice %308 {offsets = [0, 96], sizes = [8, 32], strides = [1, 1]} : vector<8x128xf32> to vector<8x32xf32>
    %312 = vector.extract_strided_slice %303 {offsets = [0, 64], sizes = [8, 32], strides = [1, 1]} : vector<8x128xf32> to vector<8x32xf32>
    %313 = math.tanh %312 : vector<8x32xf32>
    %314 = arith.mulf %310, %299 : vector<8x32xf32>
    %315 = arith.mulf %309, %313 : vector<8x32xf32>
    %316 = arith.addf %314, %315 : vector<8x32xf32>
    %317 = math.tanh %316 : vector<8x32xf32>
    %318 = arith.mulf %311, %317 : vector<8x32xf32>
    %319 = tpu.concatenate %199, %216, %233, %250, %267, %284, %301, %318 in 0 : vector<8x32xf32>, vector<8x32xf32>, vector<8x32xf32>, vector<8x32xf32>, vector<8x32xf32>, vector<8x32xf32>, vector<8x32xf32>, vector<8x32xf32> -> vector<64x32xf32>
    %cst_54 = arith.constant dense<0.000000e+00> : vector<64x128xf32>
    %320 = tpu.matmul %319, %6, %cst_54 {dimension_numbers = #tpu.dot_dimension_numbers<[1], [0], [0], [1], [0, 0, 1, 1], [], []>} : vector<64x32xf32>, vector<32x128xf32>, vector<64x128xf32> -> vector<64x128xf32>
    %321 = vector.broadcast %11 : vector<1x128xf32> to vector<64x128xf32>
    %322 = arith.addf %320, %321 : vector<64x128xf32>
    %323 = vector.shape_cast %322 : vector<64x128xf32> to vector<8x8x128xf32>
    %c0_55 = arith.constant 0 : index
    %c0_56 = arith.constant 0 : index
    %c0_57 = arith.constant 0 : index
    %324 = vector.load %arg5[%c0_55, %c0_56, %c0_57] : memref<8x8x128xf32, #tpu.memory_space<vmem>>, vector<8x8x128xf32>
    tpu.vector_store %arg5[%c0_55, %c0_56, %c0_57], %323 {strides = array<i32>} : memref<8x8x128xf32, #tpu.memory_space<vmem>>, vector<8x8x128xf32>,
    return
  }
  func.func @transform_0(%arg0: i32) -> (i32, i32, i32) {
    %c0_i32 = arith.constant 0 : i32
    %c0_i32_0 = arith.constant 0 : i32
    %c0_i32_1 = arith.constant 0 : i32
    return %c0_i32, %arg0, %c0_i32_0 : i32, i32, i32
  }
  func.func @transform_1(%arg0: i32) -> (i32, i32) {
    %c0_i32 = arith.constant 0 : i32
    %c0_i32_0 = arith.constant 0 : i32
    return %arg0, %c0_i32 : i32, i32
  }
  func.func @transform_2(%arg0: i32) -> (i32, i32) {
    %c0_i32 = arith.constant 0 : i32
    %c0_i32_0 = arith.constant 0 : i32
    %c0_i32_1 = arith.constant 0 : i32
    return %c0_i32, %c0_i32_0 : i32, i32
  }
  func.func @transform_3(%arg0: i32) -> (i32, i32) {
    %c0_i32 = arith.constant 0 : i32
    %c0_i32_0 = arith.constant 0 : i32
    %c0_i32_1 = arith.constant 0 : i32
    return %c0_i32, %c0_i32_0 : i32, i32
  }
  func.func @transform_4(%arg0: i32) -> (i32, i32, i32) {
    %c0_i32 = arith.constant 0 : i32
    %c0_i32_0 = arith.constant 0 : i32
    %c0_i32_1 = arith.constant 0 : i32
    return %c0_i32, %arg0, %c0_i32_0 : i32, i32, i32
  }
}

</mosaic_0001>

<llo_original>
// kernel: tpu_custom_call.1
$region0: #{tpu_custom_call.1}
  #allocation0 [shape = 'u32[]', space=smem, size = 0x4, offset = 0x4, fixed_abs, tag = 'smem constant byte address 0x4 - core index']
  #allocation1 [shape = 'u32[144,128]{1,0:T(1,128)}', space=vmem, size = 0x12000, scoped, tag = 'internal scratch']
  %s0 = inlined_call_operand.hbm [shape: f32[8,8,16], index: 0, kind: input, shape index: {}]
  %s1 = inlined_call_operand.hbm [shape: f32[8,8], index: 1, kind: input, shape index: {}]
  %s2 = inlined_call_operand.hbm [shape: f32[184,128], index: 2, kind: input, shape index: {}]
  %s3 = inlined_call_operand.vmem [shape: f32[8,128], index: 3, kind: input, shape index: {}]
  %s4 = inlined_call_operand.hbm [shape: f32[8,8,128], index: 4, kind: output, shape index: {}]
  %s5 = sld [smem:[#allocation0]]
  $region38: #{tpu_custom_call.1} parent=0
    _
  %s7 = ssub.s32 1, %s5
  %s8 = scalar_select 0, %s7, %s5
  $region1: #{tpu_custom_call.1} parent=0
    #allocation2 [shape = 'u8[32768]{0}', space=vmem, size = 0x8000, scoped, tag = 'input window, operand 0, single buffered']
    #allocation3 [shape = 's32[1]{0}', space=sflag, size = 0x4, scoped, tag = 'scoped memory for tpu_custom_call.1']
    #allocation4 [shape = 's32[1]{0}', space=sflag, size = 0x4, scoped, tag = 'scoped memory for tpu_custom_call.1']
    #allocation5 [shape = 'u8[4096]{0}', space=vmem, size = 0x1000, scoped, tag = 'input window, operand 1, single buffered']
    #allocation6 [shape = 's32[1]{0}', space=sflag, size = 0x4, scoped, tag = 'scoped memory for tpu_custom_call.1']
    #allocation7 [shape = 'u8[94208]{0}', space=vmem, size = 0x17000, scoped, tag = 'input window, operand 2, single buffered']
    #allocation8 [shape = 'u8[32768]{0}', space=vmem, size = 0x8000, scoped, tag = 'output window, operand 0, single buffered']
    %9 = vsyncpa [#allocation3], 0
    %10 = vsyncpa [#allocation6], 0
    %11 = vsyncpa [#allocation4], 0
    // Predicated region
    $region2: #{tpu_custom_call.1} parent=1 // pred_check
      _
    $region3: #{tpu_custom_call.1} parent=1 // pred_check_branch
      %13 = sbr.rel (0) target = $region5
    $region4: #{tpu_custom_call.1} parent=1 // pred_region
      %s15 = ssub.s32 1024, 1024
      %16 = vsyncadd [#allocation3], %s15
      %s17 = sshll.u32 [#allocation2], 4
      %s18 = int_to_ptr.vmem [resolvable:$true] %s17
      %23 = dma.hbm_to_vmem [thread:$0]  %s0, 1024, %s18, [#allocation3], 128, 128, 8
    $region5: #{tpu_custom_call.1} parent=1 // pred_fallthru
      _
    // Predicated region
    $region6: #{tpu_custom_call.1} parent=1 // pred_check
      _
    $region7: #{tpu_custom_call.1} parent=1 // pred_check_branch
      %25 = sbr.rel (0) target = $region9
    $region8: #{tpu_custom_call.1} parent=1 // pred_region
      %s27 = ssub.s32 128, 128
      %28 = vsyncadd [#allocation6], %s27
      %s30 = sshll.u32 [#allocation5], 4
      %s31 = int_to_ptr.vmem [resolvable:$true] %s30
      %33 = dma.hbm_to_vmem [thread:$0]  %s1, 128, %s31, [#allocation6]
    $region9: #{tpu_custom_call.1} parent=1 // pred_fallthru
      _
    // Predicated region
    $region10: #{tpu_custom_call.1} parent=1 // pred_check
      _
    $region11: #{tpu_custom_call.1} parent=1 // pred_check_branch
      %35 = sbr.rel (0) target = $region13
    $region12: #{tpu_custom_call.1} parent=1 // pred_region
      %s37 = ssub.s32 2944, 2944
      %38 = vsyncadd [#allocation6], %s37
      %s39 = sshll.u32 [#allocation7], 4
      %s40 = int_to_ptr.vmem [resolvable:$true] %s39
      %45 = dma.hbm_to_vmem [thread:$0]  %s2, 2944, %s40, [#allocation6], 128, 128, 8
    $region13: #{tpu_custom_call.1} parent=1 // pred_fallthru
      _
    // Predicated region
    $region14: #{tpu_custom_call.1} parent=1 // pred_check
      _
    $region15: #{tpu_custom_call.1} parent=1 // pred_check_branch
      %47 = sbr.rel (0) target = $region17
    $region16: #{tpu_custom_call.1} parent=1 // pred_region
      _
    $region17: #{tpu_custom_call.1} parent=1 // pred_fallthru
      _
    // Predicated region
    $region18: #{tpu_custom_call.1} parent=1 // pred_check
      _
    $region19: #{tpu_custom_call.1} parent=1 // pred_check_branch
      %49 = sbr.rel (0) target = $region21
    $region20: #{tpu_custom_call.1} parent=1 // pred_region
      %50 = dma.done [#allocation3], 1024
    $region21: #{tpu_custom_call.1} parent=1 // pred_fallthru
      _
    // Predicated region
    $region22: #{tpu_custom_call.1} parent=1 // pred_check
      _
    $region23: #{tpu_custom_call.1} parent=1 // pred_check_branch
      %52 = sbr.rel (0) target = $region25
    $region24: #{tpu_custom_call.1} parent=1 // pred_region
      %53 = dma.done [#allocation6], 128
    $region25: #{tpu_custom_call.1} parent=1 // pred_fallthru
      _
    // Predicated region
    $region26: #{tpu_custom_call.1} parent=1 // pred_check
      _
    $region27: #{tpu_custom_call.1} parent=1 // pred_check_branch
      %55 = sbr.rel (0) target = $region29
    $region28: #{tpu_custom_call.1} parent=1 // pred_region
      %56 = dma.done [#allocation6], 2944
    $region29: #{tpu_custom_call.1} parent=1 // pred_fallthru
      _
    %v57 = vld [vmem:[#allocation7] sm:$0xff]
    %v58 = vld [vmem:[#allocation7 + $0x8] sm:$0xff]
    %v59 = vld [vmem:[#allocation7 + $0x10] sm:$0xff]
    %v60 = vld [vmem:[#allocation7 + $0x18] sm:$0xff]
    %v61 = vld [vmem:[#allocation7 + $0x20] sm:$0xff]
    %v62 = vld [vmem:[#allocation7 + $0x28] sm:$0xff]
    %v63 = vld [vmem:[#allocation7 + $0x30] sm:$0xff]
    %v64 = vld [vmem:[#allocation7 + $0x38] sm:$0xff]
    %v65 = vld [vmem:[#allocation7 + $0x40] sm:$0xff]
    %v66 = vld [vmem:[#allocation7 + $0x48] sm:$0xff]
    %v67 = vld [vmem:[#allocation7 + $0x50] sm:$0xff]
    %v68 = vld [vmem:[#allocation7 + $0x58] sm:$0xff]
    %v69 = vld [vmem:[#allocation7 + $0x60] sm:$0xff]
    %v70 = vld [vmem:[#allocation7 + $0x68] sm:$0xff]
    %v71 = vld [vmem:[#allocation7 + $0x70] sm:$0xff]
    %v72 = vld [vmem:[#allocation7 + $0x78] sm:$0xff]
    %v73 = vld [vmem:[#allocation7 + $0x80] sm:$0xff]
    %v74 = vld [vmem:[#allocation7 + $0x88] sm:$0xff]
    %v75 = vld [vmem:[#allocation7 + $0x90] sm:$0xff]
    %v76 = vld [vmem:[#allocation7 + $0x98] sm:$0xff]
    %v77 = vld [vmem:[#allocation7 + $0xa0] sm:$0xff]
    %v78 = vld [vmem:[#allocation7 + $0xa8] sm:$0xff]
    %v79 = vld [vmem:[#allocation7 + $0xb0] sm:$0xff]
    %v80 = vld [vmem:[%s3] sm:$0x1]
    %v81 = vld [vmem:[%s3 + $0x1] sm:$0x1]
    %v82 = vld [vmem:[%s3 + $0x2] sm:$0x1]
    %v83 = vld [vmem:[%s3 + $0x3] sm:$0x1]
    %v84 = vld [vmem:[%s3 + $0x4] sm:$0x1]
    %v85 = vld [vmem:[#allocation2] sm:$0xff]
    %v86 = vld [vmem:[#allocation2 + $0x8] sm:$0xff]
    %v87 = vld [vmem:[#allocation2 + $0x10] sm:$0xff]
    %v88 = vld [vmem:[#allocation2 + $0x18] sm:$0xff]
    %v89 = vld [vmem:[#allocation2 + $0x20] sm:$0xff]
    %v90 = vld [vmem:[#allocation2 + $0x28] sm:$0xff]
    %v91 = vld [vmem:[#allocation2 + $0x30] sm:$0xff]
    %v92 = vld [vmem:[#allocation2 + $0x38] sm:$0xff]
    %v93 = vlaneseq
    %v94 = vshrl.u32 %v93, 7
    %v95 = vsub.s32 0, %v94
    %v96 = vrot.slane %v80, %v95
    %vm97 = vcmask 130048
    %v99 = vsel %vm97, %v85, 0
    %v102 = vsel %vm97, %v86, 0
    %v105 = vsel %vm97, %v87, 0
    %v108 = vsel %vm97, %v88, 0
    %v111 = vsel %vm97, %v89, 0
    %v114 = vsel %vm97, %v90, 0
    %v117 = vsel %vm97, %v91, 0
    %v120 = vsel %vm97, %v92, 0
    %122 = vmatprep.subr.mxu0 0.0
    %123 = vmatpush1.msra.mxu0 %v57
    %124 = vmatprep.subr.mxu0 0.0
    %125 = vmatpush1.msra.mxu0 %v58
    %126 = vmatprep.subr.mxu0 0.0
    %127 = vmatpush1.msra.mxu0 0.0
    %128 = vmatprep.subr.mxu0 0.0
    %129 = vmatpush1.msra.mxu0 0.0
    %130 = vmatprep.subr.mxu0 0.0
    %131 = vmatpush1.msra.mxu0 0.0
    %132 = vmatprep.subr.mxu0 0.0
    %133 = vmatpush1.msra.mxu0 0.0
    %134 = vmatprep.subr.mxu0 0.0
    %135 = vmatpush1.msra.mxu0 0.0
    %136 = vmatprep.subr.mxu0 0.0
    %137 = vmatpush1.msra.mxu0 0.0
    %138 = vmatprep.subr.mxu0 0.0
    %139 = vmatpush1.msra.mxu0 0.0
    %140 = vmatprep.subr.mxu0 0.0
    %141 = vmatpush1.msra.mxu0 0.0
    %142 = vmatprep.subr.mxu0 0.0
    %143 = vmatpush1.msra.mxu0 0.0
    %144 = vmatprep.subr.mxu0 0.0
    %145 = vmatpush1.msra.mxu0 0.0
    %146 = vmatprep.subr.mxu0 0.0
    %147 = vmatpush1.msra.mxu0 0.0
    %148 = vmatprep.subr.mxu0 0.0
    %149 = vmatpush1.msra.mxu0 0.0
    %150 = vmatprep.subr.mxu0 0.0
    %151 = vmatpush1.msra.mxu0 0.0
    %152 = vmatprep.subr.mxu0 0.0
    %153 = vmatpush1.msra.mxu0 0.0
    %154 = vmatprep.subr.mxu0 0.0
    %155 = vmatpush1.msra.mxu0 0.0
    %156 = vmatprep.subr.mxu0 0.0
    %157 = vmatpush1.msra.mxu0 0.0
    %158 = vmatprep.subr.mxu0 0.0
    %159 = vmatpush1.msra.mxu0 0.0
    %160 = vmatprep.subr.mxu0 0.0
    %161 = vmatpush1.msra.mxu0 0.0
    %162 = vmatprep.subr.mxu0 0.0
    %163 = vmatpush1.msra.mxu0 0.0
    %164 = vmatprep.subr.mxu0 0.0
    %165 = vmatpush1.msra.mxu0 0.0
    %166 = vmatprep.subr.mxu0 0.0
    %167 = vmatpush1.msra.mxu0 0.0
    %168 = vmatprep.subr.mxu0 0.0
    %169 = vmatpush1.msra.mxu0 0.0
    %170 = vmatprep.subr.mxu0 0.0
    %171 = vmatpush1.msra.mxu0 0.0
    %172 = vmatprep.subr.mxu0 0.0
    %173 = vmatpush1.msra.mxu0 0.0
    %174 = vmatprep.subr.mxu0 0.0
    %175 = vmatpush1.msra.mxu0 0.0
    %176 = vmatprep.subr.mxu0 0.0
    %177 = vmatpush1.msra.mxu0 0.0
    %178 = vmatprep.subr.mxu0 0.0
    %179 = vmatpush1.msra.mxu0 0.0
    %180 = vmatprep.subr.mxu0 0.0
    %181 = vmatpush1.msra.mxu0 0.0
    %182 = vmatprep.subr.mxu0 0.0
    %183 = vmatpush1.msra.mxu0 0.0
    %184 = vmatprep.subr.mxu0 0.0
    %185 = vmatpush1.msra.mxu0 0.0
    %186 = vmatprep.mubr.f32.mxu0 0.0
    %187 = vmatmul.mubr.f32.gmra.mrb[0].mxu0 %v99
    %v188 = vpop.f32.mrb[0].mxu0
    %v189 = vadd.f32 %v96, %v188
    %v190 = vpop.f32.mrb[0].mxu0
    %191 = vmatprep.mubr.f32.mxu0 0.0
    %192 = vmatmul.mubr.f32.gmra.mrb[0].mxu0 %v102
    %v193 = vpop.f32.mrb[0].mxu0
    %v194 = vadd.f32 %v96, %v193
    %v195 = vpop.f32.mrb[0].mxu0
    %196 = vmatprep.mubr.f32.mxu0 0.0
    %197 = vmatmul.mubr.f32.gmra.mrb[0].mxu0 %v105
    %v198 = vpop.f32.mrb[0].mxu0
    %v199 = vadd.f32 %v96, %v198
    %v200 = vpop.f32.mrb[0].mxu0
    %201 = vmatprep.mubr.f32.mxu0 0.0
    %202 = vmatmul.mubr.f32.gmra.mrb[0].mxu0 %v108
    %v203 = vpop.f32.mrb[0].mxu0
    %v204 = vadd.f32 %v96, %v203
    %v205 = vpop.f32.mrb[0].mxu0
    %206 = vmatprep.mubr.f32.mxu0 0.0
    %207 = vmatmul.mubr.f32.gmra.mrb[0].mxu0 %v111
    %v208 = vpop.f32.mrb[0].mxu0
    %v209 = vadd.f32 %v96, %v208
    %v210 = vpop.f32.mrb[0].mxu0
    %211 = vmatprep.mubr.f32.mxu0 0.0
    %212 = vmatmul.mubr.f32.gmra.mrb[0].mxu0 %v114
    %v213 = vpop.f32.mrb[0].mxu0
    %v214 = vadd.f32 %v96, %v213
    %v215 = vpop.f32.mrb[0].mxu0
    %216 = vmatprep.mubr.f32.mxu0 0.0
    %217 = vmatmul.mubr.f32.gmra.mrb[0].mxu0 %v117
    %v218 = vpop.f32.mrb[0].mxu0
    %v219 = vadd.f32 %v96, %v218
    %v220 = vpop.f32.mrb[0].mxu0
    %221 = vmatprep.mubr.f32.mxu0 0.0
    %222 = vmatmul.mubr.f32.gmra.mrb[0].mxu0 %v120
    %v223 = vpop.f32.mrb[0].mxu0
    %v224 = vadd.f32 %v96, %v223
    %v225 = vpop.f32.mrb[0].mxu0
    %226 = vdwg.mxu0
    %v227 = vld [vmem:[#allocation5] sm:$0xff]
    %v228 = vlaneseq
    %v229 = vshrl.u32 %v228, 7
    %v230 = vsub.s32 0, %v229
    %v231 = vrot.slane %v81, %v230
    %vm232 = vcmask 64512
    %v234 = vsel %vm232, %v227, 0
    %236 = vmatprep.subr.mxu0 0.0
    %237 = vmatpush1.msra.mxu0 %v75
    %238 = vmatprep.subr.mxu0 0.0
    %239 = vmatpush1.msra.mxu0 0.0
    %240 = vmatprep.subr.mxu0 0.0
    %241 = vmatpush1.msra.mxu0 0.0
    %242 = vmatprep.subr.mxu0 0.0
    %243 = vmatpush1.msra.mxu0 0.0
    %244 = vmatprep.subr.mxu0 0.0
    %245 = vmatpush1.msra.mxu0 0.0
    %246 = vmatprep.subr.mxu0 0.0
    %247 = vmatpush1.msra.mxu0 0.0
    %248 = vmatprep.subr.mxu0 0.0
    %249 = vmatpush1.msra.mxu0 0.0
    %250 = vmatprep.subr.mxu0 0.0
    %251 = vmatpush1.msra.mxu0 0.0
    %252 = vmatprep.subr.mxu0 0.0
    %253 = vmatpush1.msra.mxu0 0.0
    %254 = vmatprep.subr.mxu0 0.0
    %255 = vmatpush1.msra.mxu0 0.0
    %256 = vmatprep.subr.mxu0 0.0
    %257 = vmatpush1.msra.mxu0 0.0
    %258 = vmatprep.subr.mxu0 0.0
    %259 = vmatpush1.msra.mxu0 0.0
    %260 = vmatprep.subr.mxu0 0.0
    %261 = vmatpush1.msra.mxu0 0.0
    %262 = vmatprep.subr.mxu0 0.0
    %263 = vmatpush1.msra.mxu0 0.0
    %264 = vmatprep.subr.mxu0 0.0
    %265 = vmatpush1.msra.mxu0 0.0
    %266 = vmatprep.subr.mxu0 0.0
    %267 = vmatpush1.msra.mxu0 0.0
    %268 = vmatprep.subr.mxu0 0.0
    %269 = vmatpush1.msra.mxu0 0.0
    %270 = vmatprep.subr.mxu0 0.0
    %271 = vmatpush1.msra.mxu0 0.0
    %272 = vmatprep.subr.mxu0 0.0
    %273 = vmatpush1.msra.mxu0 0.0
    %274 = vmatprep.subr.mxu0 0.0
    %275 = vmatpush1.msra.mxu0 0.0
    %276 = vmatprep.subr.mxu0 0.0
    %277 = vmatpush1.msra.mxu0 0.0
    %278 = vmatprep.subr.mxu0 0.0
    %279 = vmatpush1.msra.mxu0 0.0
    %280 = vmatprep.subr.mxu0 0.0
    %281 = vmatpush1.msra.mxu0 0.0
    %282 = vmatprep.subr.mxu0 0.0
    %283 = vmatpush1.msra.mxu0 0.0
    %284 = vmatprep.subr.mxu0 0.0
    %285 = vmatpush1.msra.mxu0 0.0
    %286 = vmatprep.subr.mxu0 0.0
    %287 = vmatpush1.msra.mxu0 0.0
    %288 = vmatprep.subr.mxu0 0.0
    %289 = vmatpush1.msra.mxu0 0.0
    %290 = vmatprep.subr.mxu0 0.0
    %291 = vmatpush1.msra.mxu0 0.0
    %292 = vmatprep.subr.mxu0 0.0
    %293 = vmatpush1.msra.mxu0 0.0
    %294 = vmatprep.subr.mxu0 0.0
    %295 = vmatpush1.msra.mxu0 0.0
    %296 = vmatprep.subr.mxu0 0.0
    %297 = vmatpush1.msra.mxu0 0.0
    %298 = vmatprep.subr.mxu0 0.0
    %299 = vmatpush1.msra.mxu0 0.0
    %300 = vmatprep.mubr.f32.mxu0 0.0
    %301 = vmatmul.mubr.f32.gmra.mrb[0].mxu0 %v234
    %v302 = vpop.f32.mrb[0].mxu0
    %v303 = vadd.f32 %v231, %v302
    %v304 = vpop.f32.mrb[0].mxu0
    %305 = vdwg.mxu0
    %v306 = vlaneseq
    %v307 = vshrl.u32 %v306, 7
    %v308 = vsub.s32 0, %v307
    %v309 = vrot.slane %v82, %v308
    %v310 = vlaneseq
    %v311 = vshrl.u32 %v310, 7
    %v312 = vsub.s32 0, %v311
    %v313 = vrot.slane %v83, %v312
    %vm314 = vcmask 261120
    %v316 = vsel %vm314, 0.0, 0
    %318 = vmatprep.subr.mxu0 0.0
    %319 = vmatpush1.msra.mxu0 %v59
    %320 = vmatprep.subr.mxu0 0.0
    %321 = vmatpush1.msra.mxu0 %v60
    %322 = vmatprep.subr.mxu0 0.0
    %323 = vmatpush1.msra.mxu0 %v61
    %324 = vmatprep.subr.mxu0 0.0
    %325 = vmatpush1.msra.mxu0 %v62
    %326 = vmatprep.subr.mxu0 0.0
    %327 = vmatpush1.msra.mxu0 0.0
    %328 = vmatprep.subr.mxu0 0.0
    %329 = vmatpush1.msra.mxu0 0.0
    %330 = vmatprep.subr.mxu0 0.0
    %331 = vmatpush1.msra.mxu0 0.0
    %332 = vmatprep.subr.mxu0 0.0
    %333 = vmatpush1.msra.mxu0 0.0
    %334 = vmatprep.subr.mxu0 0.0
    %335 = vmatpush1.msra.mxu0 0.0
    %336 = vmatprep.subr.mxu0 0.0
    %337 = vmatpush1.msra.mxu0 0.0
    %338 = vmatprep.subr.mxu0 0.0
    %339 = vmatpush1.msra.mxu0 0.0
    %340 = vmatprep.subr.mxu0 0.0
    %341 = vmatpush1.msra.mxu0 0.0
    %342 = vmatprep.subr.mxu0 0.0
    %343 = vmatpush1.msra.mxu0 0.0
    %344 = vmatprep.subr.mxu0 0.0
    %345 = vmatpush1.msra.mxu0 0.0
    %346 = vmatprep.subr.mxu0 0.0
    %347 = vmatpush1.msra.mxu0 0.0
    %348 = vmatprep.subr.mxu0 0.0
    %349 = vmatpush1.msra.mxu0 0.0
    %350 = vmatprep.subr.mxu0 0.0
    %351 = vmatpush1.msra.mxu0 0.0
    %352 = vmatprep.subr.mxu0 0.0
    %353 = vmatpush1.msra.mxu0 0.0
    %354 = vmatprep.subr.mxu0 0.0
    %355 = vmatpush1.msra.mxu0 0.0
    %356 = vmatprep.subr.mxu0 0.0
    %357 = vmatpush1.msra.mxu0 0.0
    %358 = vmatprep.subr.mxu0 0.0
    %359 = vmatpush1.msra.mxu0 0.0
    %360 = vmatprep.subr.mxu0 0.0
    %361 = vmatpush1.msra.mxu0 0.0
    %362 = vmatprep.subr.mxu0 0.0
    %363 = vmatpush1.msra.mxu0 0.0
    %364 = vmatprep.subr.mxu0 0.0
    %365 = vmatpush1.msra.mxu0 0.0
    %366 = vmatprep.subr.mxu0 0.0
    %367 = vmatpush1.msra.mxu0 0.0
    %368 = vmatprep.subr.mxu0 0.0
    %369 = vmatpush1.msra.mxu0 0.0
    %370 = vmatprep.subr.mxu0 0.0
    %371 = vmatpush1.msra.mxu0 0.0
    %372 = vmatprep.subr.mxu0 0.0
    %373 = vmatpush1.msra.mxu0 0.0
    %374 = vmatprep.subr.mxu0 0.0
    %375 = vmatpush1.msra.mxu0 0.0
    %376 = vmatprep.subr.mxu0 0.0
    %377 = vmatpush1.msra.mxu0 0.0
    %378 = vmatprep.subr.mxu0 0.0
    %379 = vmatpush1.msra.mxu0 0.0
    %380 = vmatprep.subr.mxu0 0.0
    %381 = vmatpush1.msra.mxu0 0.0
    %382 = vmatprep.mubr.f32.mxu0 0.0
    %383 = vmatmul.mubr.f32.gmra.mrb[0].mxu0 %v316
    %v384 = vpop.f32.mrb[0].mxu0
    %v385 = vadd.f32 0.0, %v384
    %v386 = vpop.f32.mrb[0].mxu0
    %387 = vdwg.mxu0
    %v388 = vadd.f32 %v189, %v385
    %v389 = vxor.u32 %v388, 2147483648
    %v390 = vmul.f32 %v389, 1.442695
    %v391 = vpow.pop %v390
    %v392 = vadd.f32 %v391, 1.0
    %v393 = vrcp.pop %v392
    %v394 = vmul.f32 1.0, %v393
    %v395 = vtanh.pop %v388
    %v396 = vmul.f32 %v394, 0.0
    %398 = vrot.lane.b32.xlu0 %v395, 64
    %v399 = vpop.permute.xlu0 %398
    %v401 = vmul.f32 %v394, %v399
    %403 = vrot.lane.b32.xlu0 %v401, 32
    %v404 = vpop.permute.xlu0 %403
    %v406 = vadd.f32 %v396, %v404
    %v407 = vtanh.pop %v406
    %409 = vrot.lane.b32.xlu0 %v407, 64
    %v410 = vpop.permute.xlu0 %409
    %v412 = vmul.f32 %v394, %v410
    %414 = vrot.lane.b32.xlu0 %v412, 32
    %v415 = vpop.permute.xlu0 %414
    %v416 = vsel %vm314, %v415, 0
    %418 = vmatprep.subr.mxu0 0.0
    %419 = vmatpush1.msra.mxu0 %v59
    %420 = vmatprep.subr.mxu0 0.0
    %421 = vmatpush1.msra.mxu0 %v60
    %422 = vmatprep.subr.mxu0 0.0
    %423 = vmatpush1.msra.mxu0 %v61
    %424 = vmatprep.subr.mxu0 0.0
    %425 = vmatpush1.msra.mxu0 %v62
    %426 = vmatprep.subr.mxu0 0.0
    %427 = vmatpush1.msra.mxu0 0.0
    %428 = vmatprep.subr.mxu0 0.0
    %429 = vmatpush1.msra.mxu0 0.0
    %430 = vmatprep.subr.mxu0 0.0
    %431 = vmatpush1.msra.mxu0 0.0
    %432 = vmatprep.subr.mxu0 0.0
    %433 = vmatpush1.msra.mxu0 0.0
    %434 = vmatprep.subr.mxu0 0.0
    %435 = vmatpush1.msra.mxu0 0.0
    %436 = vmatprep.subr.mxu0 0.0
    %437 = vmatpush1.msra.mxu0 0.0
    %438 = vmatprep.subr.mxu0 0.0
    %439 = vmatpush1.msra.mxu0 0.0
    %440 = vmatprep.subr.mxu0 0.0
    %441 = vmatpush1.msra.mxu0 0.0
    %442 = vmatprep.subr.mxu0 0.0
    %443 = vmatpush1.msra.mxu0 0.0
    %444 = vmatprep.subr.mxu0 0.0
    %445 = vmatpush1.msra.mxu0 0.0
    %446 = vmatprep.subr.mxu0 0.0
    %447 = vmatpush1.msra.mxu0 0.0
    %448 = vmatprep.subr.mxu0 0.0
    %449 = vmatpush1.msra.mxu0 0.0
    %450 = vmatprep.subr.mxu0 0.0
    %451 = vmatpush1.msra.mxu0 0.0
    %452 = vmatprep.subr.mxu0 0.0
    %453 = vmatpush1.msra.mxu0 0.0
    %454 = vmatprep.subr.mxu0 0.0
    %455 = vmatpush1.msra.mxu0 0.0
    %456 = vmatprep.subr.mxu0 0.0
    %457 = vmatpush1.msra.mxu0 0.0
    %458 = vmatprep.subr.mxu0 0.0
    %459 = vmatpush1.msra.mxu0 0.0
    %460 = vmatprep.subr.mxu0 0.0
    %461 = vmatpush1.msra.mxu0 0.0
    %462 = vmatprep.subr.mxu0 0.0
    %463 = vmatpush1.msra.mxu0 0.0
    %464 = vmatprep.subr.mxu0 0.0
    %465 = vmatpush1.msra.mxu0 0.0
    %466 = vmatprep.subr.mxu0 0.0
    %467 = vmatpush1.msra.mxu0 0.0
    %468 = vmatprep.subr.mxu0 0.0
    %469 = vmatpush1.msra.mxu0 0.0
    %470 = vmatprep.subr.mxu0 0.0
    %471 = vmatpush1.msra.mxu0 0.0
    %472 = vmatprep.subr.mxu0 0.0
    %473 = vmatpush1.msra.mxu0 0.0
    %474 = vmatprep.subr.mxu0 0.0
    %475 = vmatpush1.msra.mxu0 0.0
    %476 = vmatprep.subr.mxu0 0.0
    %477 = vmatpush1.msra.mxu0 0.0
    %478 = vmatprep.subr.mxu0 0.0
    %479 = vmatpush1.msra.mxu0 0.0
    %480 = vmatprep.subr.mxu0 0.0
    %481 = vmatpush1.msra.mxu0 0.0
    %482 = vmatprep.mubr.f32.mxu0 0.0
    %483 = vmatmul.mubr.f32.gmra.mrb[0].mxu0 %v416
    %v484 = vpop.f32.mrb[0].mxu0
    %v485 = vadd.f32 0.0, %v484
    %v486 = vpop.f32.mrb[0].mxu0
    %487 = vdwg.mxu0
    %v488 = vadd.f32 %v194, %v485
    %v489 = vxor.u32 %v488, 2147483648
    %v490 = vmul.f32 %v489, 1.442695
    %v491 = vpow.pop %v490
    %v492 = vadd.f32 %v491, 1.0
    %v493 = vrcp.pop %v492
    %v494 = vmul.f32 1.0, %v493
    %v495 = vtanh.pop %v488
    %v496 = vmul.f32 %v494, %v406
    %498 = vrot.lane.b32.xlu0 %v495, 64
    %v499 = vpop.permute.xlu0 %498
    %v501 = vmul.f32 %v494, %v499
    %503 = vrot.lane.b32.xlu0 %v501, 32
    %v504 = vpop.permute.xlu0 %503
    %v506 = vadd.f32 %v496, %v504
    %v507 = vtanh.pop %v506
    %509 = vrot.lane.b32.xlu0 %v507, 64
    %v510 = vpop.permute.xlu0 %509
    %v512 = vmul.f32 %v494, %v510
    %514 = vrot.lane.b32.xlu0 %v512, 32
    %v515 = vpop.permute.xlu0 %514
    %v516 = vsel %vm314, %v515, 0
    %518 = vmatprep.subr.mxu0 0.0
    %519 = vmatpush1.msra.mxu0 %v59
    %520 = vmatprep.subr.mxu0 0.0
    %521 = vmatpush1.msra.mxu0 %v60
    %522 = vmatprep.subr.mxu0 0.0
    %523 = vmatpush1.msra.mxu0 %v61
    %524 = vmatprep.subr.mxu0 0.0
    %525 = vmatpush1.msra.mxu0 %v62
    %526 = vmatprep.subr.mxu0 0.0
    %527 = vmatpush1.msra.mxu0 0.0
    %528 = vmatprep.subr.mxu0 0.0
    %529 = vmatpush1.msra.mxu0 0.0
    %530 = vmatprep.subr.mxu0 0.0
    %531 = vmatpush1.msra.mxu0 0.0
    %532 = vmatprep.subr.mxu0 0.0
    %533 = vmatpush1.msra.mxu0 0.0
    %534 = vmatprep.subr.mxu0 0.0
    %535 = vmatpush1.msra.mxu0 0.0
    %536 = vmatprep.subr.mxu0 0.0
    %537 = vmatpush1.msra.mxu0 0.0
    %538 = vmatprep.subr.mxu0 0.0
    %539 = vmatpush1.msra.mxu0 0.0
    %540 = vmatprep.subr.mxu0 0.0
    %541 = vmatpush1.msra.mxu0 0.0
    %542 = vmatprep.subr.mxu0 0.0
    %543 = vmatpush1.msra.mxu0 0.0
    %544 = vmatprep.subr.mxu0 0.0
    %545 = vmatpush1.msra.mxu0 0.0
    %546 = vmatprep.subr.mxu0 0.0
    %547 = vmatpush1.msra.mxu0 0.0
    %548 = vmatprep.subr.mxu0 0.0
    %549 = vmatpush1.msra.mxu0 0.0
    %550 = vmatprep.subr.mxu0 0.0
    %551 = vmatpush1.msra.mxu0 0.0
    %552 = vmatprep.subr.mxu0 0.0
    %553 = vmatpush1.msra.mxu0 0.0
    %554 = vmatprep.subr.mxu0 0.0
    %555 = vmatpush1.msra.mxu0 0.0
    %556 = vmatprep.subr.mxu0 0.0
    %557 = vmatpush1.msra.mxu0 0.0
    %558 = vmatprep.subr.mxu0 0.0
    %559 = vmatpush1.msra.mxu0 0.0
    %560 = vmatprep.subr.mxu0 0.0
    %561 = vmatpush1.msra.mxu0 0.0
    %562 = vmatprep.subr.mxu0 0.0
    %563 = vmatpush1.msra.mxu0 0.0
    %564 = vmatprep.subr.mxu0 0.0
    %565 = vmatpush1.msra.mxu0 0.0
    %566 = vmatprep.subr.mxu0 0.0
    %567 = vmatpush1.msra.mxu0 0.0
    %568 = vmatprep.subr.mxu0 0.0
    %569 = vmatpush1.msra.mxu0 0.0
    %570 = vmatprep.subr.mxu0 0.0
    %571 = vmatpush1.msra.mxu0 0.0
    %572 = vmatprep.subr.mxu0 0.0
    %573 = vmatpush1.msra.mxu0 0.0
    %574 = vmatprep.subr.mxu0 0.0
    %575 = vmatpush1.msra.mxu0 0.0
    %576 = vmatprep.subr.mxu0 0.0
    %577 = vmatpush1.msra.mxu0 0.0
    %578 = vmatprep.subr.mxu0 0.0
    %579 = vmatpush1.msra.mxu0 0.0
    %580 = vmatprep.subr.mxu0 0.0
    %581 = vmatpush1.msra.mxu0 0.0
    %582 = vmatprep.mubr.f32.mxu0 0.0
    %583 = vmatmul.mubr.f32.gmra.mrb[0].mxu0 %v516
    %v584 = vpop.f32.mrb[0].mxu0
    %v585 = vadd.f32 0.0, %v584
    %v586 = vpop.f32.mrb[0].mxu0
    %587 = vdwg.mxu0
    %v588 = vadd.f32 %v199, %v585
    %v589 = vxor.u32 %v588, 2147483648
    %v590 = vmul.f32 %v589, 1.442695
    %v591 = vpow.pop %v590
    %v592 = vadd.f32 %v591, 1.0
    %v593 = vrcp.pop %v592
    %v594 = vmul.f32 1.0, %v593
    %v595 = vtanh.pop %v588
    %v596 = vmul.f32 %v594, %v506
    %598 = vrot.lane.b32.xlu0 %v595, 64
    %v599 = vpop.permute.xlu0 %598
    %v601 = vmul.f32 %v594, %v599
    %603 = vrot.lane.b32.xlu0 %v601, 32
    %v604 = vpop.permute.xlu0 %603
    %v606 = vadd.f32 %v596, %v604
    %v607 = vtanh.pop %v606
    %609 = vrot.lane.b32.xlu0 %v607, 64
    %v610 = vpop.permute.xlu0 %609
    %v612 = vmul.f32 %v594, %v610
    %614 = vrot.lane.b32.xlu0 %v612, 32
    %v615 = vpop.permute.xlu0 %614
    %v616 = vsel %vm314, %v615, 0
    %618 = vmatprep.subr.mxu0 0.0
    %619 = vmatpush1.msra.mxu0 %v59
    %620 = vmatprep.subr.mxu0 0.0
    %621 = vmatpush1.msra.mxu0 %v60
    %622 = vmatprep.subr.mxu0 0.0
    %623 = vmatpush1.msra.mxu0 %v61
    %624 = vmatprep.subr.mxu0 0.0
    %625 = vmatpush1.msra.mxu0 %v62
    %626 = vmatprep.subr.mxu0 0.0
    %627 = vmatpush1.msra.mxu0 0.0
    %628 = vmatprep.subr.mxu0 0.0
    %629 = vmatpush1.msra.mxu0 0.0
    %630 = vmatprep.subr.mxu0 0.0
    %631 = vmatpush1.msra.mxu0 0.0
    %632 = vmatprep.subr.mxu0 0.0
    %633 = vmatpush1.msra.mxu0 0.0
    %634 = vmatprep.subr.mxu0 0.0
    %635 = vmatpush1.msra.mxu0 0.0
    %636 = vmatprep.subr.mxu0 0.0
    %637 = vmatpush1.msra.mxu0 0.0
    %638 = vmatprep.subr.mxu0 0.0
    %639 = vmatpush1.msra.mxu0 0.0
    %640 = vmatprep.subr.mxu0 0.0
    %641 = vmatpush1.msra.mxu0 0.0
    %642 = vmatprep.subr.mxu0 0.0
    %643 = vmatpush1.msra.mxu0 0.0
    %644 = vmatprep.subr.mxu0 0.0
    %645 = vmatpush1.msra.mxu0 0.0
    %646 = vmatprep.subr.mxu0 0.0
    %647 = vmatpush1.msra.mxu0 0.0
    %648 = vmatprep.subr.mxu0 0.0
    %649 = vmatpush1.msra.mxu0 0.0
    %650 = vmatprep.subr.mxu0 0.0
    %651 = vmatpush1.msra.mxu0 0.0
    %652 = vmatprep.subr.mxu0 0.0
    %653 = vmatpush1.msra.mxu0 0.0
    %654 = vmatprep.subr.mxu0 0.0
    %655 = vmatpush1.msra.mxu0 0.0
    %656 = vmatprep.subr.mxu0 0.0
    %657 = vmatpush1.msra.mxu0 0.0
    %658 = vmatprep.subr.mxu0 0.0
    %659 = vmatpush1.msra.mxu0 0.0
    %660 = vmatprep.subr.mxu0 0.0
    %661 = vmatpush1.msra.mxu0 0.0
    %662 = vmatprep.subr.mxu0 0.0
    %663 = vmatpush1.msra.mxu0 0.0
    %664 = vmatprep.subr.mxu0 0.0
    %665 = vmatpush1.msra.mxu0 0.0
    %666 = vmatprep.subr.mxu0 0.0
    %667 = vmatpush1.msra.mxu0 0.0
    %668 = vmatprep.subr.mxu0 0.0
    %669 = vmatpush1.msra.mxu0 0.0
    %670 = vmatprep.subr.mxu0 0.0
    %671 = vmatpush1.msra.mxu0 0.0
    %672 = vmatprep.subr.mxu0 0.0
    %673 = vmatpush1.msra.mxu0 0.0
    %674 = vmatprep.subr.mxu0 0.0
    %675 = vmatpush1.msra.mxu0 0.0
    %676 = vmatprep.subr.mxu0 0.0
    %677 = vmatpush1.msra.mxu0 0.0
    %678 = vmatprep.subr.mxu0 0.0
    %679 = vmatpush1.msra.mxu0 0.0
    %680 = vmatprep.subr.mxu0 0.0
    %681 = vmatpush1.msra.mxu0 0.0
    %682 = vmatprep.mubr.f32.mxu0 0.0
    %683 = vmatmul.mubr.f32.gmra.mrb[0].mxu0 %v616
    %v684 = vpop.f32.mrb[0].mxu0
    %v685 = vadd.f32 0.0, %v684
    %v686 = vpop.f32.mrb[0].mxu0
    %687 = vdwg.mxu0
    %v688 = vadd.f32 %v204, %v685
    %v689 = vxor.u32 %v688, 2147483648
    %v690 = vmul.f32 %v689, 1.442695
    %v691 = vpow.pop %v690
    %v692 = vadd.f32 %v691, 1.0
    %v693 = vrcp.pop %v692
    %v694 = vmul.f32 1.0, %v693
    %v695 = vtanh.pop %v688
    %v696 = vmul.f32 %v694, %v606
    %698 = vrot.lane.b32.xlu0 %v695, 64
    %v699 = vpop.permute.xlu0 %698
    %v701 = vmul.f32 %v694, %v699
    %703 = vrot.lane.b32.xlu0 %v701, 32
    %v704 = vpop.permute.xlu0 %703
    %v706 = vadd.f32 %v696, %v704
    %v707 = vtanh.pop %v706
    %709 = vrot.lane.b32.xlu0 %v707, 64
    %v710 = vpop.permute.xlu0 %709
    %v712 = vmul.f32 %v694, %v710
    %714 = vrot.lane.b32.xlu0 %v712, 32
    %v715 = vpop.permute.xlu0 %714
    %v716 = vsel %vm314, %v715, 0
    %718 = vmatprep.subr.mxu0 0.0
    %719 = vmatpush1.msra.mxu0 %v59
    %720 = vmatprep.subr.mxu0 0.0
    %721 = vmatpush1.msra.mxu0 %v60
    %722 = vmatprep.subr.mxu0 0.0
    %723 = vmatpush1.msra.mxu0 %v61
    %724 = vmatprep.subr.mxu0 0.0
    %725 = vmatpush1.msra.mxu0 %v62
    %726 = vmatprep.subr.mxu0 0.0
    %727 = vmatpush1.msra.mxu0 0.0
    %728 = vmatprep.subr.mxu0 0.0
    %729 = vmatpush1.msra.mxu0 0.0
    %730 = vmatprep.subr.mxu0 0.0
    %731 = vmatpush1.msra.mxu0 0.0
    %732 = vmatprep.subr.mxu0 0.0
    %733 = vmatpush1.msra.mxu0 0.0
    %734 = vmatprep.subr.mxu0 0.0
    %735 = vmatpush1.msra.mxu0 0.0
    %736 = vmatprep.subr.mxu0 0.0
    %737 = vmatpush1.msra.mxu0 0.0
    %738 = vmatprep.subr.mxu0 0.0
    %739 = vmatpush1.msra.mxu0 0.0
    %740 = vmatprep.subr.mxu0 0.0
    %741 = vmatpush1.msra.mxu0 0.0
    %742 = vmatprep.subr.mxu0 0.0
    %743 = vmatpush1.msra.mxu0 0.0
    %744 = vmatprep.subr.mxu0 0.0
    %745 = vmatpush1.msra.mxu0 0.0
    %746 = vmatprep.subr.mxu0 0.0
    %747 = vmatpush1.msra.mxu0 0.0
    %748 = vmatprep.subr.mxu0 0.0
    %749 = vmatpush1.msra.mxu0 0.0
    %750 = vmatprep.subr.mxu0 0.0
    %751 = vmatpush1.msra.mxu0 0.0
    %752 = vmatprep.subr.mxu0 0.0
    %753 = vmatpush1.msra.mxu0 0.0
    %754 = vmatprep.subr.mxu0 0.0
    %755 = vmatpush1.msra.mxu0 0.0
    %756 = vmatprep.subr.mxu0 0.0
    %757 = vmatpush1.msra.mxu0 0.0
    %758 = vmatprep.subr.mxu0 0.0
    %759 = vmatpush1.msra.mxu0 0.0
    %760 = vmatprep.subr.mxu0 0.0
    %761 = vmatpush1.msra.mxu0 0.0
    %762 = vmatprep.subr.mxu0 0.0
    %763 = vmatpush1.msra.mxu0 0.0
    %764 = vmatprep.subr.mxu0 0.0
    %765 = vmatpush1.msra.mxu0 0.0
    %766 = vmatprep.subr.mxu0 0.0
    %767 = vmatpush1.msra.mxu0 0.0
    %768 = vmatprep.subr.mxu0 0.0
    %769 = vmatpush1.msra.mxu0 0.0
    %770 = vmatprep.subr.mxu0 0.0
    %771 = vmatpush1.msra.mxu0 0.0
    %772 = vmatprep.subr.mxu0 0.0
    %773 = vmatpush1.msra.mxu0 0.0
    %774 = vmatprep.subr.mxu0 0.0
    %775 = vmatpush1.msra.mxu0 0.0
    %776 = vmatprep.subr.mxu0 0.0
    %777 = vmatpush1.msra.mxu0 0.0
    %778 = vmatprep.subr.mxu0 0.0
    %779 = vmatpush1.msra.mxu0 0.0
    %780 = vmatprep.subr.mxu0 0.0
    %781 = vmatpush1.msra.mxu0 0.0
    %782 = vmatprep.mubr.f32.mxu0 0.0
    %783 = vmatmul.mubr.f32.gmra.mrb[0].mxu0 %v716
    %v784 = vpop.f32.mrb[0].mxu0
    %v785 = vadd.f32 0.0, %v784
    %v786 = vpop.f32.mrb[0].mxu0
    %787 = vdwg.mxu0
    %v788 = vadd.f32 %v209, %v785
    %v789 = vxor.u32 %v788, 2147483648
    %v790 = vmul.f32 %v789, 1.442695
    %v791 = vpow.pop %v790
    %v792 = vadd.f32 %v791, 1.0
    %v793 = vrcp.pop %v792
    %v794 = vmul.f32 1.0, %v793
    %v795 = vtanh.pop %v788
    %v796 = vmul.f32 %v794, %v706
    %798 = vrot.lane.b32.xlu0 %v795, 64
    %v799 = vpop.permute.xlu0 %798
    %v801 = vmul.f32 %v794, %v799
    %803 = vrot.lane.b32.xlu0 %v801, 32
    %v804 = vpop.permute.xlu0 %803
    %v806 = vadd.f32 %v796, %v804
    %v807 = vtanh.pop %v806
    %809 = vrot.lane.b32.xlu0 %v807, 64
    %v810 = vpop.permute.xlu0 %809
    %v812 = vmul.f32 %v794, %v810
    %814 = vrot.lane.b32.xlu0 %v812, 32
    %v815 = vpop.permute.xlu0 %814
    %v816 = vsel %vm314, %v815, 0
    %818 = vmatprep.subr.mxu0 0.0
    %819 = vmatpush1.msra.mxu0 %v59
    %820 = vmatprep.subr.mxu0 0.0
    %821 = vmatpush1.msra.mxu0 %v60
    %822 = vmatprep.subr.mxu0 0.0
    %823 = vmatpush1.msra.mxu0 %v61
    %824 = vmatprep.subr.mxu0 0.0
    %825 = vmatpush1.msra.mxu0 %v62
    %826 = vmatprep.subr.mxu0 0.0
    %827 = vmatpush1.msra.mxu0 0.0
    %828 = vmatprep.subr.mxu0 0.0
    %829 = vmatpush1.msra.mxu0 0.0
    %830 = vmatprep.subr.mxu0 0.0
    %831 = vmatpush1.msra.mxu0 0.0
    %832 = vmatprep.subr.mxu0 0.0
    %833 = vmatpush1.msra.mxu0 0.0
    %834 = vmatprep.subr.mxu0 0.0
    %835 = vmatpush1.msra.mxu0 0.0
    %836 = vmatprep.subr.mxu0 0.0
    %837 = vmatpush1.msra.mxu0 0.0
    %838 = vmatprep.subr.mxu0 0.0
    %839 = vmatpush1.msra.mxu0 0.0
    %840 = vmatprep.subr.mxu0 0.0
    %841 = vmatpush1.msra.mxu0 0.0
    %842 = vmatprep.subr.mxu0 0.0
    %843 = vmatpush1.msra.mxu0 0.0
    %844 = vmatprep.subr.mxu0 0.0
    %845 = vmatpush1.msra.mxu0 0.0
    %846 = vmatprep.subr.mxu0 0.0
    %847 = vmatpush1.msra.mxu0 0.0
    %848 = vmatprep.subr.mxu0 0.0
    %849 = vmatpush1.msra.mxu0 0.0
    %850 = vmatprep.subr.mxu0 0.0
    %851 = vmatpush1.msra.mxu0 0.0
    %852 = vmatprep.subr.mxu0 0.0
    %853 = vmatpush1.msra.mxu0 0.0
    %854 = vmatprep.subr.mxu0 0.0
    %855 = vmatpush1.msra.mxu0 0.0
    %856 = vmatprep.subr.mxu0 0.0
    %857 = vmatpush1.msra.mxu0 0.0
    %858 = vmatprep.subr.mxu0 0.0
    %859 = vmatpush1.msra.mxu0 0.0
    %860 = vmatprep.subr.mxu0 0.0
    %861 = vmatpush1.msra.mxu0 0.0
    %862 = vmatprep.subr.mxu0 0.0
    %863 = vmatpush1.msra.mxu0 0.0
    %864 = vmatprep.subr.mxu0 0.0
    %865 = vmatpush1.msra.mxu0 0.0
    %866 = vmatprep.subr.mxu0 0.0
    %867 = vmatpush1.msra.mxu0 0.0
    %868 = vmatprep.subr.mxu0 0.0
    %869 = vmatpush1.msra.mxu0 0.0
    %870 = vmatprep.subr.mxu0 0.0
    %871 = vmatpush1.msra.mxu0 0.0
    %872 = vmatprep.subr.mxu0 0.0
    %873 = vmatpush1.msra.mxu0 0.0
    %874 = vmatprep.subr.mxu0 0.0
    %875 = vmatpush1.msra.mxu0 0.0
    %876 = vmatprep.subr.mxu0 0.0
    %877 = vmatpush1.msra.mxu0 0.0
    %878 = vmatprep.subr.mxu0 0.0
    %879 = vmatpush1.msra.mxu0 0.0
    %880 = vmatprep.subr.mxu0 0.0
    %881 = vmatpush1.msra.mxu0 0.0
    %882 = vmatprep.mubr.f32.mxu0 0.0
    %883 = vmatmul.mubr.f32.gmra.mrb[0].mxu0 %v816
    %v884 = vpop.f32.mrb[0].mxu0
    %v885 = vadd.f32 0.0, %v884
    %v886 = vpop.f32.mrb[0].mxu0
    %887 = vdwg.mxu0
    %v888 = vadd.f32 %v214, %v885
    %v889 = vxor.u32 %v888, 2147483648
    %v890 = vmul.f32 %v889, 1.442695
    %v891 = vpow.pop %v890
    %v892 = vadd.f32 %v891, 1.0
    %v893 = vrcp.pop %v892
    %v894 = vmul.f32 1.0, %v893
    %v895 = vtanh.pop %v888
    %v896 = vmul.f32 %v894, %v806
    %898 = vrot.lane.b32.xlu0 %v895, 64
    %v899 = vpop.permute.xlu0 %898
    %v901 = vmul.f32 %v894, %v899
    %903 = vrot.lane.b32.xlu0 %v901, 32
    %v904 = vpop.permute.xlu0 %903
    %v906 = vadd.f32 %v896, %v904
    %v907 = vtanh.pop %v906
    %909 = vrot.lane.b32.xlu0 %v907, 64
    %v910 = vpop.permute.xlu0 %909
    %v912 = vmul.f32 %v894, %v910
    %914 = vrot.lane.b32.xlu0 %v912, 32
    %v915 = vpop.permute.xlu0 %914
    %v916 = vsel %vm314, %v915, 0
    %918 = vmatprep.subr.mxu0 0.0
    %919 = vmatpush1.msra.mxu0 %v59
    %920 = vmatprep.subr.mxu0 0.0
    %921 = vmatpush1.msra.mxu0 %v60
    %922 = vmatprep.subr.mxu0 0.0
    %923 = vmatpush1.msra.mxu0 %v61
    %924 = vmatprep.subr.mxu0 0.0
    %925 = vmatpush1.msra.mxu0 %v62
    %926 = vmatprep.subr.mxu0 0.0
    %927 = vmatpush1.msra.mxu0 0.0
    %928 = vmatprep.subr.mxu0 0.0
    %929 = vmatpush1.msra.mxu0 0.0
    %930 = vmatprep.subr.mxu0 0.0
    %931 = vmatpush1.msra.mxu0 0.0
    %932 = vmatprep.subr.mxu0 0.0
    %933 = vmatpush1.msra.mxu0 0.0
    %934 = vmatprep.subr.mxu0 0.0
    %935 = vmatpush1.msra.mxu0 0.0
    %936 = vmatprep.subr.mxu0 0.0
    %937 = vmatpush1.msra.mxu0 0.0
    %938 = vmatprep.subr.mxu0 0.0
    %939 = vmatpush1.msra.mxu0 0.0
    %940 = vmatprep.subr.mxu0 0.0
    %941 = vmatpush1.msra.mxu0 0.0
    %942 = vmatprep.subr.mxu0 0.0
    %943 = vmatpush1.msra.mxu0 0.0
    %944 = vmatprep.subr.mxu0 0.0
    %945 = vmatpush1.msra.mxu0 0.0
    %946 = vmatprep.subr.mxu0 0.0
    %947 = vmatpush1.msra.mxu0 0.0
    %948 = vmatprep.subr.mxu0 0.0
    %949 = vmatpush1.msra.mxu0 0.0
    %950 = vmatprep.subr.mxu0 0.0
    %951 = vmatpush1.msra.mxu0 0.0
    %952 = vmatprep.subr.mxu0 0.0
    %953 = vmatpush1.msra.mxu0 0.0
    %954 = vmatprep.subr.mxu0 0.0
    %955 = vmatpush1.msra.mxu0 0.0
    %956 = vmatprep.subr.mxu0 0.0
    %957 = vmatpush1.msra.mxu0 0.0
    %958 = vmatprep.subr.mxu0 0.0
    %959 = vmatpush1.msra.mxu0 0.0
    %960 = vmatprep.subr.mxu0 0.0
    %961 = vmatpush1.msra.mxu0 0.0
    %962 = vmatprep.subr.mxu0 0.0
    %963 = vmatpush1.msra.mxu0 0.0
    %964 = vmatprep.subr.mxu0 0.0
    %965 = vmatpush1.msra.mxu0 0.0
    %966 = vmatprep.subr.mxu0 0.0
    %967 = vmatpush1.msra.mxu0 0.0
    %968 = vmatprep.subr.mxu0 0.0
    %969 = vmatpush1.msra.mxu0 0.0
    %970 = vmatprep.subr.mxu0 0.0
    %971 = vmatpush1.msra.mxu0 0.0
    %972 = vmatprep.subr.mxu0 0.0
    %973 = vmatpush1.msra.mxu0 0.0
    %974 = vmatprep.subr.mxu0 0.0
    %975 = vmatpush1.msra.mxu0 0.0
    %976 = vmatprep.subr.mxu0 0.0
    %977 = vmatpush1.msra.mxu0 0.0
    %978 = vmatprep.subr.mxu0 0.0
    %979 = vmatpush1.msra.mxu0 0.0
    %980 = vmatprep.subr.mxu0 0.0
    %981 = vmatpush1.msra.mxu0 0.0
    %982 = vmatprep.mubr.f32.mxu0 0.0
    %983 = vmatmul.mubr.f32.gmra.mrb[0].mxu0 %v916
    %v984 = vpop.f32.mrb[0].mxu0
    %v985 = vadd.f32 0.0, %v984
    %v986 = vpop.f32.mrb[0].mxu0
    %987 = vdwg.mxu0
    %v988 = vadd.f32 %v219, %v985
    %v989 = vxor.u32 %v988, 2147483648
    %v990 = vmul.f32 %v989, 1.442695
    %v991 = vpow.pop %v990
    %v992 = vadd.f32 %v991, 1.0
    %v993 = vrcp.pop %v992
    %v994 = vmul.f32 1.0, %v993
    %v995 = vtanh.pop %v988
    %v996 = vmul.f32 %v994, %v906
    %998 = vrot.lane.b32.xlu0 %v995, 64
    %v999 = vpop.permute.xlu0 %998
    %v1001 = vmul.f32 %v994, %v999
    %1003 = vrot.lane.b32.xlu0 %v1001, 32
    %v1004 = vpop.permute.xlu0 %1003
    %v1006 = vadd.f32 %v996, %v1004
    %v1007 = vtanh.pop %v1006
    %1009 = vrot.lane.b32.xlu0 %v1007, 64
    %v1010 = vpop.permute.xlu0 %1009
    %v1012 = vmul.f32 %v994, %v1010
    %1014 = vrot.lane.b32.xlu0 %v1012, 32
    %v1015 = vpop.permute.xlu0 %1014
    %v1016 = vsel %vm314, %v1015, 0
    %1018 = vmatprep.subr.mxu0 0.0
    %1019 = vmatpush1.msra.mxu0 %v59
    %1020 = vmatprep.subr.mxu0 0.0
    %1021 = vmatpush1.msra.mxu0 %v60
    %1022 = vmatprep.subr.mxu0 0.0
    %1023 = vmatpush1.msra.mxu0 %v61
    %1024 = vmatprep.subr.mxu0 0.0
    %1025 = vmatpush1.msra.mxu0 %v62
    %1026 = vmatprep.subr.mxu0 0.0
    %1027 = vmatpush1.msra.mxu0 0.0
    %1028 = vmatprep.subr.mxu0 0.0
    %1029 = vmatpush1.msra.mxu0 0.0
    %1030 = vmatprep.subr.mxu0 0.0
    %1031 = vmatpush1.msra.mxu0 0.0
    %1032 = vmatprep.subr.mxu0 0.0
    %1033 = vmatpush1.msra.mxu0 0.0
    %1034 = vmatprep.subr.mxu0 0.0
    %1035 = vmatpush1.msra.mxu0 0.0
    %1036 = vmatprep.subr.mxu0 0.0
    %1037 = vmatpush1.msra.mxu0 0.0
    %1038 = vmatprep.subr.mxu0 0.0
    %1039 = vmatpush1.msra.mxu0 0.0
    %1040 = vmatprep.subr.mxu0 0.0
    %1041 = vmatpush1.msra.mxu0 0.0
    %1042 = vmatprep.subr.mxu0 0.0
    %1043 = vmatpush1.msra.mxu0 0.0
    %1044 = vmatprep.subr.mxu0 0.0
    %1045 = vmatpush1.msra.mxu0 0.0
    %1046 = vmatprep.subr.mxu0 0.0
    %1047 = vmatpush1.msra.mxu0 0.0
    %1048 = vmatprep.subr.mxu0 0.0
    %1049 = vmatpush1.msra.mxu0 0.0
    %1050 = vmatprep.subr.mxu0 0.0
    %1051 = vmatpush1.msra.mxu0 0.0
    %1052 = vmatprep.subr.mxu0 0.0
    %1053 = vmatpush1.msra.mxu0 0.0
    %1054 = vmatprep.subr.mxu0 0.0
    %1055 = vmatpush1.msra.mxu0 0.0
    %1056 = vmatprep.subr.mxu0 0.0
    %1057 = vmatpush1.msra.mxu0 0.0
    %1058 = vmatprep.subr.mxu0 0.0
    %1059 = vmatpush1.msra.mxu0 0.0
    %1060 = vmatprep.subr.mxu0 0.0
    %1061 = vmatpush1.msra.mxu0 0.0
    %1062 = vmatprep.subr.mxu0 0.0
    %1063 = vmatpush1.msra.mxu0 0.0
    %1064 = vmatprep.subr.mxu0 0.0
    %1065 = vmatpush1.msra.mxu0 0.0
    %1066 = vmatprep.subr.mxu0 0.0
    %1067 = vmatpush1.msra.mxu0 0.0
    %1068 = vmatprep.subr.mxu0 0.0
    %1069 = vmatpush1.msra.mxu0 0.0
    %1070 = vmatprep.subr.mxu0 0.0
    %1071 = vmatpush1.msra.mxu0 0.0
    %1072 = vmatprep.subr.mxu0 0.0
    %1073 = vmatpush1.msra.mxu0 0.0
    %1074 = vmatprep.subr.mxu0 0.0
    %1075 = vmatpush1.msra.mxu0 0.0
    %1076 = vmatprep.subr.mxu0 0.0
    %1077 = vmatpush1.msra.mxu0 0.0
    %1078 = vmatprep.subr.mxu0 0.0
    %1079 = vmatpush1.msra.mxu0 0.0
    %1080 = vmatprep.subr.mxu0 0.0
    %1081 = vmatpush1.msra.mxu0 0.0
    %1082 = vmatprep.mubr.f32.mxu0 0.0
    %1083 = vmatmul.mubr.f32.gmra.mrb[0].mxu0 %v1016
    %v1084 = vpop.f32.mrb[0].mxu0
    %v1085 = vadd.f32 0.0, %v1084
    %v1086 = vpop.f32.mrb[0].mxu0
    %1087 = vdwg.mxu0
    %v1088 = vadd.f32 %v224, %v1085
    %v1089 = vxor.u32 %v1088, 2147483648
    %v1090 = vmul.f32 %v1089, 1.442695
    %v1091 = vpow.pop %v1090
    %v1092 = vadd.f32 %v1091, 1.0
    %v1093 = vrcp.pop %v1092
    %v1094 = vmul.f32 1.0, %v1093
    %v1095 = vtanh.pop %v1088
    %v1096 = vmul.f32 %v1094, %v1006
    %1098 = vrot.lane.b32.xlu0 %v1095, 64
    %v1099 = vpop.permute.xlu0 %1098
    %v1101 = vmul.f32 %v1094, %v1099
    %1103 = vrot.lane.b32.xlu0 %v1101, 32
    %v1104 = vpop.permute.xlu0 %1103
    %v1106 = vadd.f32 %v1096, %v1104
    %v1107 = vtanh.pop %v1106
    %1109 = vrot.lane.b32.xlu0 %v1107, 64
    %v1110 = vpop.permute.xlu0 %1109
    %v1112 = vmul.f32 %v1094, %v1110
    %1114 = vrot.lane.b32.xlu0 %v1112, 32
    %v1115 = vpop.permute.xlu0 %1114
    %v1116 = vsel %vm314, %v1115, 0
    %1118 = vmatprep.subr.mxu0 0.0
    %1119 = vmatpush1.msra.mxu0 %v71
    %1120 = vmatprep.subr.mxu0 0.0
    %1121 = vmatpush1.msra.mxu0 %v72
    %1122 = vmatprep.subr.mxu0 0.0
    %1123 = vmatpush1.msra.mxu0 %v73
    %1124 = vmatprep.subr.mxu0 0.0
    %1125 = vmatpush1.msra.mxu0 %v74
    %1126 = vmatprep.subr.mxu0 0.0
    %1127 = vmatpush1.msra.mxu0 0.0
    %1128 = vmatprep.subr.mxu0 0.0
    %1129 = vmatpush1.msra.mxu0 0.0
    %1130 = vmatprep.subr.mxu0 0.0
    %1131 = vmatpush1.msra.mxu0 0.0
    %1132 = vmatprep.subr.mxu0 0.0
    %1133 = vmatpush1.msra.mxu0 0.0
    %1134 = vmatprep.subr.mxu0 0.0
    %1135 = vmatpush1.msra.mxu0 0.0
    %1136 = vmatprep.subr.mxu0 0.0
    %1137 = vmatpush1.msra.mxu0 0.0
    %1138 = vmatprep.subr.mxu0 0.0
    %1139 = vmatpush1.msra.mxu0 0.0
    %1140 = vmatprep.subr.mxu0 0.0
    %1141 = vmatpush1.msra.mxu0 0.0
    %1142 = vmatprep.subr.mxu0 0.0
    %1143 = vmatpush1.msra.mxu0 0.0
    %1144 = vmatprep.subr.mxu0 0.0
    %1145 = vmatpush1.msra.mxu0 0.0
    %1146 = vmatprep.subr.mxu0 0.0
    %1147 = vmatpush1.msra.mxu0 0.0
    %1148 = vmatprep.subr.mxu0 0.0
    %1149 = vmatpush1.msra.mxu0 0.0
    %1150 = vmatprep.subr.mxu0 0.0
    %1151 = vmatpush1.msra.mxu0 0.0
    %1152 = vmatprep.subr.mxu0 0.0
    %1153 = vmatpush1.msra.mxu0 0.0
    %1154 = vmatprep.subr.mxu0 0.0
    %1155 = vmatpush1.msra.mxu0 0.0
    %1156 = vmatprep.subr.mxu0 0.0
    %1157 = vmatpush1.msra.mxu0 0.0
    %1158 = vmatprep.subr.mxu0 0.0
    %1159 = vmatpush1.msra.mxu0 0.0
    %1160 = vmatprep.subr.mxu0 0.0
    %1161 = vmatpush1.msra.mxu0 0.0
    %1162 = vmatprep.subr.mxu0 0.0
    %1163 = vmatpush1.msra.mxu0 0.0
    %1164 = vmatprep.subr.mxu0 0.0
    %1165 = vmatpush1.msra.mxu0 0.0
    %1166 = vmatprep.subr.mxu0 0.0
    %1167 = vmatpush1.msra.mxu0 0.0
    %1168 = vmatprep.subr.mxu0 0.0
    %1169 = vmatpush1.msra.mxu0 0.0
    %1170 = vmatprep.subr.mxu0 0.0
    %1171 = vmatpush1.msra.mxu0 0.0
    %1172 = vmatprep.subr.mxu0 0.0
    %1173 = vmatpush1.msra.mxu0 0.0
    %1174 = vmatprep.subr.mxu0 0.0
    %1175 = vmatpush1.msra.mxu0 0.0
    %1176 = vmatprep.subr.mxu0 0.0
    %1177 = vmatpush1.msra.mxu0 0.0
    %1178 = vmatprep.subr.mxu0 0.0
    %1179 = vmatpush1.msra.mxu0 0.0
    %1180 = vmatprep.subr.mxu0 0.0
    %1181 = vmatpush1.msra.mxu0 0.0
    %1182 = vmatprep.mubr.f32.mxu0 0.0
    %1183 = vmatmul.mubr.f32.gmra.mrb[0].mxu0 %v1116
    %v1184 = vpop.f32.mrb[0].mxu0
    %v1185 = vadd.f32 %v303, %v1184
    %v1186 = vpop.f32.mrb[0].mxu0
    %1187 = vdwg.mxu0
    %v1188 = vtanh.pop %v1185
    %v1190 = vsel %vm314, %v1188, 0
    %1192 = vmatprep.subr.mxu0 0.0
    %1193 = vmatpush1.msra.mxu0 %v63
    %1194 = vmatprep.subr.mxu0 0.0
    %1195 = vmatpush1.msra.mxu0 %v64
    %1196 = vmatprep.subr.mxu0 0.0
    %1197 = vmatpush1.msra.mxu0 %v65
    %1198 = vmatprep.subr.mxu0 0.0
    %1199 = vmatpush1.msra.mxu0 %v66
    %1200 = vmatprep.subr.mxu0 0.0
    %1201 = vmatpush1.msra.mxu0 0.0
    %1202 = vmatprep.subr.mxu0 0.0
    %1203 = vmatpush1.msra.mxu0 0.0
    %1204 = vmatprep.subr.mxu0 0.0
    %1205 = vmatpush1.msra.mxu0 0.0
    %1206 = vmatprep.subr.mxu0 0.0
    %1207 = vmatpush1.msra.mxu0 0.0
    %1208 = vmatprep.subr.mxu0 0.0
    %1209 = vmatpush1.msra.mxu0 0.0
    %1210 = vmatprep.subr.mxu0 0.0
    %1211 = vmatpush1.msra.mxu0 0.0
    %1212 = vmatprep.subr.mxu0 0.0
    %1213 = vmatpush1.msra.mxu0 0.0
    %1214 = vmatprep.subr.mxu0 0.0
    %1215 = vmatpush1.msra.mxu0 0.0
    %1216 = vmatprep.subr.mxu0 0.0
    %1217 = vmatpush1.msra.mxu0 0.0
    %1218 = vmatprep.subr.mxu0 0.0
    %1219 = vmatpush1.msra.mxu0 0.0
    %1220 = vmatprep.subr.mxu0 0.0
    %1221 = vmatpush1.msra.mxu0 0.0
    %1222 = vmatprep.subr.mxu0 0.0
    %1223 = vmatpush1.msra.mxu0 0.0
    %1224 = vmatprep.subr.mxu0 0.0
    %1225 = vmatpush1.msra.mxu0 0.0
    %1226 = vmatprep.subr.mxu0 0.0
    %1227 = vmatpush1.msra.mxu0 0.0
    %1228 = vmatprep.subr.mxu0 0.0
    %1229 = vmatpush1.msra.mxu0 0.0
    %1230 = vmatprep.subr.mxu0 0.0
    %1231 = vmatpush1.msra.mxu0 0.0
    %1232 = vmatprep.subr.mxu0 0.0
    %1233 = vmatpush1.msra.mxu0 0.0
    %1234 = vmatprep.subr.mxu0 0.0
    %1235 = vmatpush1.msra.mxu0 0.0
    %1236 = vmatprep.subr.mxu0 0.0
    %1237 = vmatpush1.msra.mxu0 0.0
    %1238 = vmatprep.subr.mxu0 0.0
    %1239 = vmatpush1.msra.mxu0 0.0
    %1240 = vmatprep.subr.mxu0 0.0
    %1241 = vmatpush1.msra.mxu0 0.0
    %1242 = vmatprep.subr.mxu0 0.0
    %1243 = vmatpush1.msra.mxu0 0.0
    %1244 = vmatprep.subr.mxu0 0.0
    %1245 = vmatpush1.msra.mxu0 0.0
    %1246 = vmatprep.subr.mxu0 0.0
    %1247 = vmatpush1.msra.mxu0 0.0
    %1248 = vmatprep.subr.mxu0 0.0
    %1249 = vmatpush1.msra.mxu0 0.0
    %1250 = vmatprep.subr.mxu0 0.0
    %1251 = vmatpush1.msra.mxu0 0.0
    %1252 = vmatprep.subr.mxu0 0.0
    %1253 = vmatpush1.msra.mxu0 0.0
    %1254 = vmatprep.subr.mxu0 0.0
    %1255 = vmatpush1.msra.mxu0 0.0
    %1256 = vmatprep.mubr.f32.mxu0 0.0
    %1257 = vmatmul.mubr.f32.gmra.mrb[0].mxu0 %v1190
    %v1258 = vpop.f32.mrb[0].mxu0
    %v1259 = vadd.f32 %v309, %v1258
    %v1260 = vpop.f32.mrb[0].mxu0
    %1261 = vdwg.mxu0
    %v1262 = vxor.u32 %v1259, 2147483648
    %v1263 = vmul.f32 %v1262, 1.442695
    %v1264 = vpow.pop %v1263
    %v1265 = vadd.f32 %v1264, 1.0
    %v1266 = vrcp.pop %v1265
    %v1267 = vmul.f32 1.0, %v1266
    %v1268 = vtanh.pop %v1259
    %v1269 = vmul.f32 %v1267, %v1106
    %1271 = vrot.lane.b32.xlu0 %v1268, 64
    %v1272 = vpop.permute.xlu0 %1271
    %v1274 = vmul.f32 %v1267, %v1272
    %1276 = vrot.lane.b32.xlu0 %v1274, 32
    %v1277 = vpop.permute.xlu0 %1276
    %v1279 = vadd.f32 %v1269, %v1277
    %v1280 = vtanh.pop %v1279
    %1282 = vrot.lane.b32.xlu0 %v1280, 64
    %v1283 = vpop.permute.xlu0 %1282
    %v1285 = vmul.f32 %v1267, %v1283
    %1287 = vrot.lane.b32.xlu0 %v1285, 32
    %v1288 = vpop.permute.xlu0 %1287
    %v1289 = vsel %vm314, %v1288, 0
    %1291 = vmatprep.subr.mxu0 0.0
    %1292 = vmatpush1.msra.mxu0 %v67
    %1293 = vmatprep.subr.mxu0 0.0
    %1294 = vmatpush1.msra.mxu0 %v68
    %1295 = vmatprep.subr.mxu0 0.0
    %1296 = vmatpush1.msra.mxu0 %v69
    %1297 = vmatprep.subr.mxu0 0.0
    %1298 = vmatpush1.msra.mxu0 %v70
    %1299 = vmatprep.subr.mxu0 0.0
    %1300 = vmatpush1.msra.mxu0 0.0
    %1301 = vmatprep.subr.mxu0 0.0
    %1302 = vmatpush1.msra.mxu0 0.0
    %1303 = vmatprep.subr.mxu0 0.0
    %1304 = vmatpush1.msra.mxu0 0.0
    %1305 = vmatprep.subr.mxu0 0.0
    %1306 = vmatpush1.msra.mxu0 0.0
    %1307 = vmatprep.subr.mxu0 0.0
    %1308 = vmatpush1.msra.mxu0 0.0
    %1309 = vmatprep.subr.mxu0 0.0
    %1310 = vmatpush1.msra.mxu0 0.0
    %1311 = vmatprep.subr.mxu0 0.0
    %1312 = vmatpush1.msra.mxu0 0.0
    %1313 = vmatprep.subr.mxu0 0.0
    %1314 = vmatpush1.msra.mxu0 0.0
    %1315 = vmatprep.subr.mxu0 0.0
    %1316 = vmatpush1.msra.mxu0 0.0
    %1317 = vmatprep.subr.mxu0 0.0
    %1318 = vmatpush1.msra.mxu0 0.0
    %1319 = vmatprep.subr.mxu0 0.0
    %1320 = vmatpush1.msra.mxu0 0.0
    %1321 = vmatprep.subr.mxu0 0.0
    %1322 = vmatpush1.msra.mxu0 0.0
    %1323 = vmatprep.subr.mxu0 0.0
    %1324 = vmatpush1.msra.mxu0 0.0
    %1325 = vmatprep.subr.mxu0 0.0
    %1326 = vmatpush1.msra.mxu0 0.0
    %1327 = vmatprep.subr.mxu0 0.0
    %1328 = vmatpush1.msra.mxu0 0.0
    %1329 = vmatprep.subr.mxu0 0.0
    %1330 = vmatpush1.msra.mxu0 0.0
    %1331 = vmatprep.subr.mxu0 0.0
    %1332 = vmatpush1.msra.mxu0 0.0
    %1333 = vmatprep.subr.mxu0 0.0
    %1334 = vmatpush1.msra.mxu0 0.0
    %1335 = vmatprep.subr.mxu0 0.0
    %1336 = vmatpush1.msra.mxu0 0.0
    %1337 = vmatprep.subr.mxu0 0.0
    %1338 = vmatpush1.msra.mxu0 0.0
    %1339 = vmatprep.subr.mxu0 0.0
    %1340 = vmatpush1.msra.mxu0 0.0
    %1341 = vmatprep.subr.mxu0 0.0
    %1342 = vmatpush1.msra.mxu0 0.0
    %1343 = vmatprep.subr.mxu0 0.0
    %1344 = vmatpush1.msra.mxu0 0.0
    %1345 = vmatprep.subr.mxu0 0.0
    %1346 = vmatpush1.msra.mxu0 0.0
    %1347 = vmatprep.subr.mxu0 0.0
    %1348 = vmatpush1.msra.mxu0 0.0
    %1349 = vmatprep.subr.mxu0 0.0
    %1350 = vmatpush1.msra.mxu0 0.0
    %1351 = vmatprep.subr.mxu0 0.0
    %1352 = vmatpush1.msra.mxu0 0.0
    %1353 = vmatprep.subr.mxu0 0.0
    %1354 = vmatpush1.msra.mxu0 0.0
    %1355 = vmatprep.mubr.f32.mxu0 0.0
    %1356 = vmatmul.mubr.f32.gmra.mrb[0].mxu0 %v1289
    %v1357 = vpop.f32.mrb[0].mxu0
    %v1358 = vadd.f32 %v313, %v1357
    %v1359 = vpop.f32.mrb[0].mxu0
    %1360 = vdwg.mxu0
    %v1361 = vxor.u32 %v1358, 2147483648
    %v1362 = vmul.f32 %v1361, 1.442695
    %v1363 = vpow.pop %v1362
    %v1364 = vadd.f32 %v1363, 1.0
    %v1365 = vrcp.pop %v1364
    %v1366 = vmul.f32 1.0, %v1365
    %v1367 = vtanh.pop %v1358
    %v1368 = vmul.f32 %v1366, %v1279
    %1370 = vrot.lane.b32.xlu0 %v1367, 64
    %v1371 = vpop.permute.xlu0 %1370
    %v1373 = vmul.f32 %v1366, %v1371
    %1375 = vrot.lane.b32.xlu0 %v1373, 32
    %v1376 = vpop.permute.xlu0 %1375
    %v1378 = vadd.f32 %v1368, %v1376
    %v1379 = vtanh.pop %v1378
    %1381 = vrot.lane.b32.xlu0 %v1379, 64
    %v1382 = vpop.permute.xlu0 %1381
    %v1384 = vmul.f32 %v1366, %v1382
    %1386 = vrot.lane.b32.xlu0 %v1384, 32
    %v1387 = vpop.permute.xlu0 %1386
    %v1388 = vsel %vm314, %v1387, 0
    %1390 = vmatprep.subr.mxu0 0.0
    %1391 = vmatpush1.msra.mxu0 %v67
    %1392 = vmatprep.subr.mxu0 0.0
    %1393 = vmatpush1.msra.mxu0 %v68
    %1394 = vmatprep.subr.mxu0 0.0
    %1395 = vmatpush1.msra.mxu0 %v69
    %1396 = vmatprep.subr.mxu0 0.0
    %1397 = vmatpush1.msra.mxu0 %v70
    %1398 = vmatprep.subr.mxu0 0.0
    %1399 = vmatpush1.msra.mxu0 0.0
    %1400 = vmatprep.subr.mxu0 0.0
    %1401 = vmatpush1.msra.mxu0 0.0
    %1402 = vmatprep.subr.mxu0 0.0
    %1403 = vmatpush1.msra.mxu0 0.0
    %1404 = vmatprep.subr.mxu0 0.0
    %1405 = vmatpush1.msra.mxu0 0.0
    %1406 = vmatprep.subr.mxu0 0.0
    %1407 = vmatpush1.msra.mxu0 0.0
    %1408 = vmatprep.subr.mxu0 0.0
    %1409 = vmatpush1.msra.mxu0 0.0
    %1410 = vmatprep.subr.mxu0 0.0
    %1411 = vmatpush1.msra.mxu0 0.0
    %1412 = vmatprep.subr.mxu0 0.0
    %1413 = vmatpush1.msra.mxu0 0.0
    %1414 = vmatprep.subr.mxu0 0.0
    %1415 = vmatpush1.msra.mxu0 0.0
    %1416 = vmatprep.subr.mxu0 0.0
    %1417 = vmatpush1.msra.mxu0 0.0
    %1418 = vmatprep.subr.mxu0 0.0
    %1419 = vmatpush1.msra.mxu0 0.0
    %1420 = vmatprep.subr.mxu0 0.0
    %1421 = vmatpush1.msra.mxu0 0.0
    %1422 = vmatprep.subr.mxu0 0.0
    %1423 = vmatpush1.msra.mxu0 0.0
    %1424 = vmatprep.subr.mxu0 0.0
    %1425 = vmatpush1.msra.mxu0 0.0
    %1426 = vmatprep.subr.mxu0 0.0
    %1427 = vmatpush1.msra.mxu0 0.0
    %1428 = vmatprep.subr.mxu0 0.0
    %1429 = vmatpush1.msra.mxu0 0.0
    %1430 = vmatprep.subr.mxu0 0.0
    %1431 = vmatpush1.msra.mxu0 0.0
    %1432 = vmatprep.subr.mxu0 0.0
    %1433 = vmatpush1.msra.mxu0 0.0
    %1434 = vmatprep.subr.mxu0 0.0
    %1435 = vmatpush1.msra.mxu0 0.0
    %1436 = vmatprep.subr.mxu0 0.0
    %1437 = vmatpush1.msra.mxu0 0.0
    %1438 = vmatprep.subr.mxu0 0.0
    %1439 = vmatpush1.msra.mxu0 0.0
    %1440 = vmatprep.subr.mxu0 0.0
    %1441 = vmatpush1.msra.mxu0 0.0
    %1442 = vmatprep.subr.mxu0 0.0
    %1443 = vmatpush1.msra.mxu0 0.0
    %1444 = vmatprep.subr.mxu0 0.0
    %1445 = vmatpush1.msra.mxu0 0.0
    %1446 = vmatprep.subr.mxu0 0.0
    %1447 = vmatpush1.msra.mxu0 0.0
    %1448 = vmatprep.subr.mxu0 0.0
    %1449 = vmatpush1.msra.mxu0 0.0
    %1450 = vmatprep.subr.mxu0 0.0
    %1451 = vmatpush1.msra.mxu0 0.0
    %1452 = vmatprep.subr.mxu0 0.0
    %1453 = vmatpush1.msra.mxu0 0.0
    %1454 = vmatprep.mubr.f32.mxu0 0.0
    %1455 = vmatmul.mubr.f32.gmra.mrb[0].mxu0 %v1388
    %v1456 = vpop.f32.mrb[0].mxu0
    %v1457 = vadd.f32 %v313, %v1456
    %v1458 = vpop.f32.mrb[0].mxu0
    %1459 = vdwg.mxu0
    %v1460 = vxor.u32 %v1457, 2147483648
    %v1461 = vmul.f32 %v1460, 1.442695
    %v1462 = vpow.pop %v1461
    %v1463 = vadd.f32 %v1462, 1.0
    %v1464 = vrcp.pop %v1463
    %v1465 = vmul.f32 1.0, %v1464
    %v1466 = vtanh.pop %v1457
    %v1467 = vmul.f32 %v1465, %v1378
    %1469 = vrot.lane.b32.xlu0 %v1466, 64
    %v1470 = vpop.permute.xlu0 %1469
    %v1472 = vmul.f32 %v1465, %v1470
    %1474 = vrot.lane.b32.xlu0 %v1472, 32
    %v1475 = vpop.permute.xlu0 %1474
    %v1477 = vadd.f32 %v1467, %v1475
    %v1478 = vtanh.pop %v1477
    %1480 = vrot.lane.b32.xlu0 %v1478, 64
    %v1481 = vpop.permute.xlu0 %1480
    %v1483 = vmul.f32 %v1465, %v1481
    %1485 = vrot.lane.b32.xlu0 %v1483, 32
    %v1486 = vpop.permute.xlu0 %1485
    %v1487 = vsel %vm314, %v1486, 0
    %1489 = vmatprep.subr.mxu0 0.0
    %1490 = vmatpush1.msra.mxu0 %v67
    %1491 = vmatprep.subr.mxu0 0.0
    %1492 = vmatpush1.msra.mxu0 %v68
    %1493 = vmatprep.subr.mxu0 0.0
    %1494 = vmatpush1.msra.mxu0 %v69
    %1495 = vmatprep.subr.mxu0 0.0
    %1496 = vmatpush1.msra.mxu0 %v70
    %1497 = vmatprep.subr.mxu0 0.0
    %1498 = vmatpush1.msra.mxu0 0.0
    %1499 = vmatprep.subr.mxu0 0.0
    %1500 = vmatpush1.msra.mxu0 0.0
    %1501 = vmatprep.subr.mxu0 0.0
    %1502 = vmatpush1.msra.mxu0 0.0
    %1503 = vmatprep.subr.mxu0 0.0
    %1504 = vmatpush1.msra.mxu0 0.0
    %1505 = vmatprep.subr.mxu0 0.0
    %1506 = vmatpush1.msra.mxu0 0.0
    %1507 = vmatprep.subr.mxu0 0.0
    %1508 = vmatpush1.msra.mxu0 0.0
    %1509 = vmatprep.subr.mxu0 0.0
    %1510 = vmatpush1.msra.mxu0 0.0
    %1511 = vmatprep.subr.mxu0 0.0
    %1512 = vmatpush1.msra.mxu0 0.0
    %1513 = vmatprep.subr.mxu0 0.0
    %1514 = vmatpush1.msra.mxu0 0.0
    %1515 = vmatprep.subr.mxu0 0.0
    %1516 = vmatpush1.msra.mxu0 0.0
    %1517 = vmatprep.subr.mxu0 0.0
    %1518 = vmatpush1.msra.mxu0 0.0
    %1519 = vmatprep.subr.mxu0 0.0
    %1520 = vmatpush1.msra.mxu0 0.0
    %1521 = vmatprep.subr.mxu0 0.0
    %1522 = vmatpush1.msra.mxu0 0.0
    %1523 = vmatprep.subr.mxu0 0.0
    %1524 = vmatpush1.msra.mxu0 0.0
    %1525 = vmatprep.subr.mxu0 0.0
    %1526 = vmatpush1.msra.mxu0 0.0
    %1527 = vmatprep.subr.mxu0 0.0
    %1528 = vmatpush1.msra.mxu0 0.0
    %1529 = vmatprep.subr.mxu0 0.0
    %1530 = vmatpush1.msra.mxu0 0.0
    %1531 = vmatprep.subr.mxu0 0.0
    %1532 = vmatpush1.msra.mxu0 0.0
    %1533 = vmatprep.subr.mxu0 0.0
    %1534 = vmatpush1.msra.mxu0 0.0
    %1535 = vmatprep.subr.mxu0 0.0
    %1536 = vmatpush1.msra.mxu0 0.0
    %1537 = vmatprep.subr.mxu0 0.0
    %1538 = vmatpush1.msra.mxu0 0.0
    %1539 = vmatprep.subr.mxu0 0.0
    %1540 = vmatpush1.msra.mxu0 0.0
    %1541 = vmatprep.subr.mxu0 0.0
    %1542 = vmatpush1.msra.mxu0 0.0
    %1543 = vmatprep.subr.mxu0 0.0
    %1544 = vmatpush1.msra.mxu0 0.0
    %1545 = vmatprep.subr.mxu0 0.0
    %1546 = vmatpush1.msra.mxu0 0.0
    %1547 = vmatprep.subr.mxu0 0.0
    %1548 = vmatpush1.msra.mxu0 0.0
    %1549 = vmatprep.subr.mxu0 0.0
    %1550 = vmatpush1.msra.mxu0 0.0
    %1551 = vmatprep.subr.mxu0 0.0
    %1552 = vmatpush1.msra.mxu0 0.0
    %1553 = vmatprep.mubr.f32.mxu0 0.0
    %1554 = vmatmul.mubr.f32.gmra.mrb[0].mxu0 %v1487
    %v1555 = vpop.f32.mrb[0].mxu0
    %v1556 = vadd.f32 %v313, %v1555
    %v1557 = vpop.f32.mrb[0].mxu0
    %1558 = vdwg.mxu0
    %v1559 = vxor.u32 %v1556, 2147483648
    %v1560 = vmul.f32 %v1559, 1.442695
    %v1561 = vpow.pop %v1560
    %v1562 = vadd.f32 %v1561, 1.0
    %v1563 = vrcp.pop %v1562
    %v1564 = vmul.f32 1.0, %v1563
    %v1565 = vtanh.pop %v1556
    %v1566 = vmul.f32 %v1564, %v1477
    %1568 = vrot.lane.b32.xlu0 %v1565, 64
    %v1569 = vpop.permute.xlu0 %1568
    %v1571 = vmul.f32 %v1564, %v1569
    %1573 = vrot.lane.b32.xlu0 %v1571, 32
    %v1574 = vpop.permute.xlu0 %1573
    %v1576 = vadd.f32 %v1566, %v1574
    %v1577 = vtanh.pop %v1576
    %1579 = vrot.lane.b32.xlu0 %v1577, 64
    %v1580 = vpop.permute.xlu0 %1579
    %v1582 = vmul.f32 %v1564, %v1580
    %1584 = vrot.lane.b32.xlu0 %v1582, 32
    %v1585 = vpop.permute.xlu0 %1584
    %v1586 = vsel %vm314, %v1585, 0
    %1588 = vmatprep.subr.mxu0 0.0
    %1589 = vmatpush1.msra.mxu0 %v67
    %1590 = vmatprep.subr.mxu0 0.0
    %1591 = vmatpush1.msra.mxu0 %v68
    %1592 = vmatprep.subr.mxu0 0.0
    %1593 = vmatpush1.msra.mxu0 %v69
    %1594 = vmatprep.subr.mxu0 0.0
    %1595 = vmatpush1.msra.mxu0 %v70
    %1596 = vmatprep.subr.mxu0 0.0
    %1597 = vmatpush1.msra.mxu0 0.0
    %1598 = vmatprep.subr.mxu0 0.0
    %1599 = vmatpush1.msra.mxu0 0.0
    %1600 = vmatprep.subr.mxu0 0.0
    %1601 = vmatpush1.msra.mxu0 0.0
    %1602 = vmatprep.subr.mxu0 0.0
    %1603 = vmatpush1.msra.mxu0 0.0
    %1604 = vmatprep.subr.mxu0 0.0
    %1605 = vmatpush1.msra.mxu0 0.0
    %1606 = vmatprep.subr.mxu0 0.0
    %1607 = vmatpush1.msra.mxu0 0.0
    %1608 = vmatprep.subr.mxu0 0.0
    %1609 = vmatpush1.msra.mxu0 0.0
    %1610 = vmatprep.subr.mxu0 0.0
    %1611 = vmatpush1.msra.mxu0 0.0
    %1612 = vmatprep.subr.mxu0 0.0
    %1613 = vmatpush1.msra.mxu0 0.0
    %1614 = vmatprep.subr.mxu0 0.0
    %1615 = vmatpush1.msra.mxu0 0.0
    %1616 = vmatprep.subr.mxu0 0.0
    %1617 = vmatpush1.msra.mxu0 0.0
    %1618 = vmatprep.subr.mxu0 0.0
    %1619 = vmatpush1.msra.mxu0 0.0
    %1620 = vmatprep.subr.mxu0 0.0
    %1621 = vmatpush1.msra.mxu0 0.0
    %1622 = vmatprep.subr.mxu0 0.0
    %1623 = vmatpush1.msra.mxu0 0.0
    %1624 = vmatprep.subr.mxu0 0.0
    %1625 = vmatpush1.msra.mxu0 0.0
    %1626 = vmatprep.subr.mxu0 0.0
    %1627 = vmatpush1.msra.mxu0 0.0
    %1628 = vmatprep.subr.mxu0 0.0
    %1629 = vmatpush1.msra.mxu0 0.0
    %1630 = vmatprep.subr.mxu0 0.0
    %1631 = vmatpush1.msra.mxu0 0.0
    %1632 = vmatprep.subr.mxu0 0.0
    %1633 = vmatpush1.msra.mxu0 0.0
    %1634 = vmatprep.subr.mxu0 0.0
    %1635 = vmatpush1.msra.mxu0 0.0
    %1636 = vmatprep.subr.mxu0 0.0
    %1637 = vmatpush1.msra.mxu0 0.0
    %1638 = vmatprep.subr.mxu0 0.0
    %1639 = vmatpush1.msra.mxu0 0.0
    %1640 = vmatprep.subr.mxu0 0.0
    %1641 = vmatpush1.msra.mxu0 0.0
    %1642 = vmatprep.subr.mxu0 0.0
    %1643 = vmatpush1.msra.mxu0 0.0
    %1644 = vmatprep.subr.mxu0 0.0
    %1645 = vmatpush1.msra.mxu0 0.0
    %1646 = vmatprep.subr.mxu0 0.0
    %1647 = vmatpush1.msra.mxu0 0.0
    %1648 = vmatprep.subr.mxu0 0.0
    %1649 = vmatpush1.msra.mxu0 0.0
    %1650 = vmatprep.subr.mxu0 0.0
    %1651 = vmatpush1.msra.mxu0 0.0
    %1652 = vmatprep.mubr.f32.mxu0 0.0
    %1653 = vmatmul.mubr.f32.gmra.mrb[0].mxu0 %v1586
    %v1654 = vpop.f32.mrb[0].mxu0
    %v1655 = vadd.f32 %v313, %v1654
    %v1656 = vpop.f32.mrb[0].mxu0
    %1657 = vdwg.mxu0
    %v1658 = vxor.u32 %v1655, 2147483648
    %v1659 = vmul.f32 %v1658, 1.442695
    %v1660 = vpow.pop %v1659
    %v1661 = vadd.f32 %v1660, 1.0
    %v1662 = vrcp.pop %v1661
    %v1663 = vmul.f32 1.0, %v1662
    %v1664 = vtanh.pop %v1655
    %v1665 = vmul.f32 %v1663, %v1576
    %1667 = vrot.lane.b32.xlu0 %v1664, 64
    %v1668 = vpop.permute.xlu0 %1667
    %v1670 = vmul.f32 %v1663, %v1668
    %1672 = vrot.lane.b32.xlu0 %v1670, 32
    %v1673 = vpop.permute.xlu0 %1672
    %v1675 = vadd.f32 %v1665, %v1673
    %v1676 = vtanh.pop %v1675
    %1678 = vrot.lane.b32.xlu0 %v1676, 64
    %v1679 = vpop.permute.xlu0 %1678
    %v1681 = vmul.f32 %v1663, %v1679
    %1683 = vrot.lane.b32.xlu0 %v1681, 32
    %v1684 = vpop.permute.xlu0 %1683
    %v1685 = vsel %vm314, %v1684, 0
    %1687 = vmatprep.subr.mxu0 0.0
    %1688 = vmatpush1.msra.mxu0 %v67
    %1689 = vmatprep.subr.mxu0 0.0
    %1690 = vmatpush1.msra.mxu0 %v68
    %1691 = vmatprep.subr.mxu0 0.0
    %1692 = vmatpush1.msra.mxu0 %v69
    %1693 = vmatprep.subr.mxu0 0.0
    %1694 = vmatpush1.msra.mxu0 %v70
    %1695 = vmatprep.subr.mxu0 0.0
    %1696 = vmatpush1.msra.mxu0 0.0
    %1697 = vmatprep.subr.mxu0 0.0
    %1698 = vmatpush1.msra.mxu0 0.0
    %1699 = vmatprep.subr.mxu0 0.0
    %1700 = vmatpush1.msra.mxu0 0.0
    %1701 = vmatprep.subr.mxu0 0.0
    %1702 = vmatpush1.msra.mxu0 0.0
    %1703 = vmatprep.subr.mxu0 0.0
    %1704 = vmatpush1.msra.mxu0 0.0
    %1705 = vmatprep.subr.mxu0 0.0
    %1706 = vmatpush1.msra.mxu0 0.0
    %1707 = vmatprep.subr.mxu0 0.0
    %1708 = vmatpush1.msra.mxu0 0.0
    %1709 = vmatprep.subr.mxu0 0.0
    %1710 = vmatpush1.msra.mxu0 0.0
    %1711 = vmatprep.subr.mxu0 0.0
    %1712 = vmatpush1.msra.mxu0 0.0
    %1713 = vmatprep.subr.mxu0 0.0
    %1714 = vmatpush1.msra.mxu0 0.0
    %1715 = vmatprep.subr.mxu0 0.0
    %1716 = vmatpush1.msra.mxu0 0.0
    %1717 = vmatprep.subr.mxu0 0.0
    %1718 = vmatpush1.msra.mxu0 0.0
    %1719 = vmatprep.subr.mxu0 0.0
    %1720 = vmatpush1.msra.mxu0 0.0
    %1721 = vmatprep.subr.mxu0 0.0
    %1722 = vmatpush1.msra.mxu0 0.0
    %1723 = vmatprep.subr.mxu0 0.0
    %1724 = vmatpush1.msra.mxu0 0.0
    %1725 = vmatprep.subr.mxu0 0.0
    %1726 = vmatpush1.msra.mxu0 0.0
    %1727 = vmatprep.subr.mxu0 0.0
    %1728 = vmatpush1.msra.mxu0 0.0
    %1729 = vmatprep.subr.mxu0 0.0
    %1730 = vmatpush1.msra.mxu0 0.0
    %1731 = vmatprep.subr.mxu0 0.0
    %1732 = vmatpush1.msra.mxu0 0.0
    %1733 = vmatprep.subr.mxu0 0.0
    %1734 = vmatpush1.msra.mxu0 0.0
    %1735 = vmatprep.subr.mxu0 0.0
    %1736 = vmatpush1.msra.mxu0 0.0
    %1737 = vmatprep.subr.mxu0 0.0
    %1738 = vmatpush1.msra.mxu0 0.0
    %1739 = vmatprep.subr.mxu0 0.0
    %1740 = vmatpush1.msra.mxu0 0.0
    %1741 = vmatprep.subr.mxu0 0.0
    %1742 = vmatpush1.msra.mxu0 0.0
    %1743 = vmatprep.subr.mxu0 0.0
    %1744 = vmatpush1.msra.mxu0 0.0
    %1745 = vmatprep.subr.mxu0 0.0
    %1746 = vmatpush1.msra.mxu0 0.0
    %1747 = vmatprep.subr.mxu0 0.0
    %1748 = vmatpush1.msra.mxu0 0.0
    %1749 = vmatprep.subr.mxu0 0.0
    %1750 = vmatpush1.msra.mxu0 0.0
    %1751 = vmatprep.mubr.f32.mxu0 0.0
    %1752 = vmatmul.mubr.f32.gmra.mrb[0].mxu0 %v1685
    %v1753 = vpop.f32.mrb[0].mxu0
    %v1754 = vadd.f32 %v313, %v1753
    %v1755 = vpop.f32.mrb[0].mxu0
    %1756 = vdwg.mxu0
    %v1757 = vxor.u32 %v1754, 2147483648
    %v1758 = vmul.f32 %v1757, 1.442695
    %v1759 = vpow.pop %v1758
    %v1760 = vadd.f32 %v1759, 1.0
    %v1761 = vrcp.pop %v1760
    %v1762 = vmul.f32 1.0, %v1761
    %v1763 = vtanh.pop %v1754
    %v1764 = vmul.f32 %v1762, %v1675
    %1766 = vrot.lane.b32.xlu0 %v1763, 64
    %v1767 = vpop.permute.xlu0 %1766
    %v1769 = vmul.f32 %v1762, %v1767
    %1771 = vrot.lane.b32.xlu0 %v1769, 32
    %v1772 = vpop.permute.xlu0 %1771
    %v1774 = vadd.f32 %v1764, %v1772
    %v1775 = vtanh.pop %v1774
    %1777 = vrot.lane.b32.xlu0 %v1775, 64
    %v1778 = vpop.permute.xlu0 %1777
    %v1780 = vmul.f32 %v1762, %v1778
    %1782 = vrot.lane.b32.xlu0 %v1780, 32
    %v1783 = vpop.permute.xlu0 %1782
    %v1784 = vsel %vm314, %v1783, 0
    %1786 = vmatprep.subr.mxu0 0.0
    %1787 = vmatpush1.msra.mxu0 %v67
    %1788 = vmatprep.subr.mxu0 0.0
    %1789 = vmatpush1.msra.mxu0 %v68
    %1790 = vmatprep.subr.mxu0 0.0
    %1791 = vmatpush1.msra.mxu0 %v69
    %1792 = vmatprep.subr.mxu0 0.0
    %1793 = vmatpush1.msra.mxu0 %v70
    %1794 = vmatprep.subr.mxu0 0.0
    %1795 = vmatpush1.msra.mxu0 0.0
    %1796 = vmatprep.subr.mxu0 0.0
    %1797 = vmatpush1.msra.mxu0 0.0
    %1798 = vmatprep.subr.mxu0 0.0
    %1799 = vmatpush1.msra.mxu0 0.0
    %1800 = vmatprep.subr.mxu0 0.0
    %1801 = vmatpush1.msra.mxu0 0.0
    %1802 = vmatprep.subr.mxu0 0.0
    %1803 = vmatpush1.msra.mxu0 0.0
    %1804 = vmatprep.subr.mxu0 0.0
    %1805 = vmatpush1.msra.mxu0 0.0
    %1806 = vmatprep.subr.mxu0 0.0
    %1807 = vmatpush1.msra.mxu0 0.0
    %1808 = vmatprep.subr.mxu0 0.0
    %1809 = vmatpush1.msra.mxu0 0.0
    %1810 = vmatprep.subr.mxu0 0.0
    %1811 = vmatpush1.msra.mxu0 0.0
    %1812 = vmatprep.subr.mxu0 0.0
    %1813 = vmatpush1.msra.mxu0 0.0
    %1814 = vmatprep.subr.mxu0 0.0
    %1815 = vmatpush1.msra.mxu0 0.0
    %1816 = vmatprep.subr.mxu0 0.0
    %1817 = vmatpush1.msra.mxu0 0.0
    %1818 = vmatprep.subr.mxu0 0.0
    %1819 = vmatpush1.msra.mxu0 0.0
    %1820 = vmatprep.subr.mxu0 0.0
    %1821 = vmatpush1.msra.mxu0 0.0
    %1822 = vmatprep.subr.mxu0 0.0
    %1823 = vmatpush1.msra.mxu0 0.0
    %1824 = vmatprep.subr.mxu0 0.0
    %1825 = vmatpush1.msra.mxu0 0.0
    %1826 = vmatprep.subr.mxu0 0.0
    %1827 = vmatpush1.msra.mxu0 0.0
    %1828 = vmatprep.subr.mxu0 0.0
    %1829 = vmatpush1.msra.mxu0 0.0
    %1830 = vmatprep.subr.mxu0 0.0
    %1831 = vmatpush1.msra.mxu0 0.0
    %1832 = vmatprep.subr.mxu0 0.0
    %1833 = vmatpush1.msra.mxu0 0.0
    %1834 = vmatprep.subr.mxu0 0.0
    %1835 = vmatpush1.msra.mxu0 0.0
    %1836 = vmatprep.subr.mxu0 0.0
    %1837 = vmatpush1.msra.mxu0 0.0
    %1838 = vmatprep.subr.mxu0 0.0
    %1839 = vmatpush1.msra.mxu0 0.0
    %1840 = vmatprep.subr.mxu0 0.0
    %1841 = vmatpush1.msra.mxu0 0.0
    %1842 = vmatprep.subr.mxu0 0.0
    %1843 = vmatpush1.msra.mxu0 0.0
    %1844 = vmatprep.subr.mxu0 0.0
    %1845 = vmatpush1.msra.mxu0 0.0
    %1846 = vmatprep.subr.mxu0 0.0
    %1847 = vmatpush1.msra.mxu0 0.0
    %1848 = vmatprep.subr.mxu0 0.0
    %1849 = vmatpush1.msra.mxu0 0.0
    %1850 = vmatprep.mubr.f32.mxu0 0.0
    %1851 = vmatmul.mubr.f32.gmra.mrb[0].mxu0 %v1784
    %v1852 = vpop.f32.mrb[0].mxu0
    %v1853 = vadd.f32 %v313, %v1852
    %v1854 = vpop.f32.mrb[0].mxu0
    %1855 = vdwg.mxu0
    %v1856 = vxor.u32 %v1853, 2147483648
    %v1857 = vmul.f32 %v1856, 1.442695
    %v1858 = vpow.pop %v1857
    %v1859 = vadd.f32 %v1858, 1.0
    %v1860 = vrcp.pop %v1859
    %v1861 = vmul.f32 1.0, %v1860
    %v1862 = vtanh.pop %v1853
    %v1863 = vmul.f32 %v1861, %v1774
    %1865 = vrot.lane.b32.xlu0 %v1862, 64
    %v1866 = vpop.permute.xlu0 %1865
    %v1868 = vmul.f32 %v1861, %v1866
    %1870 = vrot.lane.b32.xlu0 %v1868, 32
    %v1871 = vpop.permute.xlu0 %1870
    %v1873 = vadd.f32 %v1863, %v1871
    %v1874 = vtanh.pop %v1873
    %1876 = vrot.lane.b32.xlu0 %v1874, 64
    %v1877 = vpop.permute.xlu0 %1876
    %v1879 = vmul.f32 %v1861, %v1877
    %1881 = vrot.lane.b32.xlu0 %v1879, 32
    %v1882 = vpop.permute.xlu0 %1881
    %v1883 = vsel %vm314, %v1882, 0
    %1885 = vmatprep.subr.mxu0 0.0
    %1886 = vmatpush1.msra.mxu0 %v67
    %1887 = vmatprep.subr.mxu0 0.0
    %1888 = vmatpush1.msra.mxu0 %v68
    %1889 = vmatprep.subr.mxu0 0.0
    %1890 = vmatpush1.msra.mxu0 %v69
    %1891 = vmatprep.subr.mxu0 0.0
    %1892 = vmatpush1.msra.mxu0 %v70
    %1893 = vmatprep.subr.mxu0 0.0
    %1894 = vmatpush1.msra.mxu0 0.0
    %1895 = vmatprep.subr.mxu0 0.0
    %1896 = vmatpush1.msra.mxu0 0.0
    %1897 = vmatprep.subr.mxu0 0.0
    %1898 = vmatpush1.msra.mxu0 0.0
    %1899 = vmatprep.subr.mxu0 0.0
    %1900 = vmatpush1.msra.mxu0 0.0
    %1901 = vmatprep.subr.mxu0 0.0
    %1902 = vmatpush1.msra.mxu0 0.0
    %1903 = vmatprep.subr.mxu0 0.0
    %1904 = vmatpush1.msra.mxu0 0.0
    %1905 = vmatprep.subr.mxu0 0.0
    %1906 = vmatpush1.msra.mxu0 0.0
    %1907 = vmatprep.subr.mxu0 0.0
    %1908 = vmatpush1.msra.mxu0 0.0
    %1909 = vmatprep.subr.mxu0 0.0
    %1910 = vmatpush1.msra.mxu0 0.0
    %1911 = vmatprep.subr.mxu0 0.0
    %1912 = vmatpush1.msra.mxu0 0.0
    %1913 = vmatprep.subr.mxu0 0.0
    %1914 = vmatpush1.msra.mxu0 0.0
    %1915 = vmatprep.subr.mxu0 0.0
    %1916 = vmatpush1.msra.mxu0 0.0
    %1917 = vmatprep.subr.mxu0 0.0
    %1918 = vmatpush1.msra.mxu0 0.0
    %1919 = vmatprep.subr.mxu0 0.0
    %1920 = vmatpush1.msra.mxu0 0.0
    %1921 = vmatprep.subr.mxu0 0.0
    %1922 = vmatpush1.msra.mxu0 0.0
    %1923 = vmatprep.subr.mxu0 0.0
    %1924 = vmatpush1.msra.mxu0 0.0
    %1925 = vmatprep.subr.mxu0 0.0
    %1926 = vmatpush1.msra.mxu0 0.0
    %1927 = vmatprep.subr.mxu0 0.0
    %1928 = vmatpush1.msra.mxu0 0.0
    %1929 = vmatprep.subr.mxu0 0.0
    %1930 = vmatpush1.msra.mxu0 0.0
    %1931 = vmatprep.subr.mxu0 0.0
    %1932 = vmatpush1.msra.mxu0 0.0
    %1933 = vmatprep.subr.mxu0 0.0
    %1934 = vmatpush1.msra.mxu0 0.0
    %1935 = vmatprep.subr.mxu0 0.0
    %1936 = vmatpush1.msra.mxu0 0.0
    %1937 = vmatprep.subr.mxu0 0.0
    %1938 = vmatpush1.msra.mxu0 0.0
    %1939 = vmatprep.subr.mxu0 0.0
    %1940 = vmatpush1.msra.mxu0 0.0
    %1941 = vmatprep.subr.mxu0 0.0
    %1942 = vmatpush1.msra.mxu0 0.0
    %1943 = vmatprep.subr.mxu0 0.0
    %1944 = vmatpush1.msra.mxu0 0.0
    %1945 = vmatprep.subr.mxu0 0.0
    %1946 = vmatpush1.msra.mxu0 0.0
    %1947 = vmatprep.subr.mxu0 0.0
    %1948 = vmatpush1.msra.mxu0 0.0
    %1949 = vmatprep.mubr.f32.mxu0 0.0
    %1950 = vmatmul.mubr.f32.gmra.mrb[0].mxu0 %v1883
    %v1951 = vpop.f32.mrb[0].mxu0
    %v1952 = vadd.f32 %v313, %v1951
    %v1953 = vpop.f32.mrb[0].mxu0
    %1954 = vdwg.mxu0
    %v1955 = vxor.u32 %v1952, 2147483648
    %v1956 = vmul.f32 %v1955, 1.442695
    %v1957 = vpow.pop %v1956
    %v1958 = vadd.f32 %v1957, 1.0
    %v1959 = vrcp.pop %v1958
    %v1960 = vmul.f32 1.0, %v1959
    %v1961 = vtanh.pop %v1952
    %v1962 = vmul.f32 %v1960, %v1873
    %1964 = vrot.lane.b32.xlu0 %v1961, 64
    %v1965 = vpop.permute.xlu0 %1964
    %v1967 = vmul.f32 %v1960, %v1965
    %1969 = vrot.lane.b32.xlu0 %v1967, 32
    %v1970 = vpop.permute.xlu0 %1969
    %v1972 = vadd.f32 %v1962, %v1970
    %v1973 = vtanh.pop %v1972
    %1975 = vrot.lane.b32.xlu0 %v1973, 64
    %v1976 = vpop.permute.xlu0 %1975
    %v1978 = vmul.f32 %v1960, %v1976
    %v1979 = vlaneseq
    %v1980 = vshrl.u32 %v1979, 7
    %v1981 = vsub.s32 0, %v1980
    %v1982 = vrot.slane %v84, %v1981
    %1984 = vrot.lane.b32.xlu0 %v1978, 32
    %v1985 = vpop.permute.xlu0 %1984
    %v1986 = vsel %vm314, %v1985, 0
    %1988 = vmatprep.subr.mxu0 0.0
    %1989 = vmatpush1.msra.mxu0 %v76
    %1990 = vmatprep.subr.mxu0 0.0
    %1991 = vmatpush1.msra.mxu0 %v77
    %1992 = vmatprep.subr.mxu0 0.0
    %1993 = vmatpush1.msra.mxu0 %v78
    %1994 = vmatprep.subr.mxu0 0.0
    %1995 = vmatpush1.msra.mxu0 %v79
    %1996 = vmatprep.subr.mxu0 0.0
    %1997 = vmatpush1.msra.mxu0 0.0
    %1998 = vmatprep.subr.mxu0 0.0
    %1999 = vmatpush1.msra.mxu0 0.0
    %2000 = vmatprep.subr.mxu0 0.0
    %2001 = vmatpush1.msra.mxu0 0.0
    %2002 = vmatprep.subr.mxu0 0.0
    %2003 = vmatpush1.msra.mxu0 0.0
    %2004 = vmatprep.subr.mxu0 0.0
    %2005 = vmatpush1.msra.mxu0 0.0
    %2006 = vmatprep.subr.mxu0 0.0
    %2007 = vmatpush1.msra.mxu0 0.0
    %2008 = vmatprep.subr.mxu0 0.0
    %2009 = vmatpush1.msra.mxu0 0.0
    %2010 = vmatprep.subr.mxu0 0.0
    %2011 = vmatpush1.msra.mxu0 0.0
    %2012 = vmatprep.subr.mxu0 0.0
    %2013 = vmatpush1.msra.mxu0 0.0
    %2014 = vmatprep.subr.mxu0 0.0
    %2015 = vmatpush1.msra.mxu0 0.0
    %2016 = vmatprep.subr.mxu0 0.0
    %2017 = vmatpush1.msra.mxu0 0.0
    %2018 = vmatprep.subr.mxu0 0.0
    %2019 = vmatpush1.msra.mxu0 0.0
    %2020 = vmatprep.subr.mxu0 0.0
    %2021 = vmatpush1.msra.mxu0 0.0
    %2022 = vmatprep.subr.mxu0 0.0
    %2023 = vmatpush1.msra.mxu0 0.0
    %2024 = vmatprep.subr.mxu0 0.0
    %2025 = vmatpush1.msra.mxu0 0.0
    %2026 = vmatprep.subr.mxu0 0.0
    %2027 = vmatpush1.msra.mxu0 0.0
    %2028 = vmatprep.subr.mxu0 0.0
    %2029 = vmatpush1.msra.mxu0 0.0
    %2030 = vmatprep.subr.mxu0 0.0
    %2031 = vmatpush1.msra.mxu0 0.0
    %2032 = vmatprep.subr.mxu0 0.0
    %2033 = vmatpush1.msra.mxu0 0.0
    %2034 = vmatprep.subr.mxu0 0.0
    %2035 = vmatpush1.msra.mxu0 0.0
    %2036 = vmatprep.subr.mxu0 0.0
    %2037 = vmatpush1.msra.mxu0 0.0
    %2038 = vmatprep.subr.mxu0 0.0
    %2039 = vmatpush1.msra.mxu0 0.0
    %2040 = vmatprep.subr.mxu0 0.0
    %2041 = vmatpush1.msra.mxu0 0.0
    %2042 = vmatprep.subr.mxu0 0.0
    %2043 = vmatpush1.msra.mxu0 0.0
    %2044 = vmatprep.subr.mxu0 0.0
    %2045 = vmatpush1.msra.mxu0 0.0
    %2046 = vmatprep.subr.mxu0 0.0
    %2047 = vmatpush1.msra.mxu0 0.0
    %2048 = vmatprep.subr.mxu0 0.0
    %2049 = vmatpush1.msra.mxu0 0.0
    %2050 = vmatprep.subr.mxu0 0.0
    %2051 = vmatpush1.msra.mxu0 0.0
    %2052 = vmatprep.mubr.f32.mxu0 0.0
    %2053 = vmatmul.mubr.f32.gmra.mrb[0].mxu0 %v1289
    %v2054 = vpop.f32.mrb[0].mxu0
    %v2055 = vadd.f32 %v1982, %v2054
    %v2056 = vpop.f32.mrb[0].mxu0
    %2057 = vmatprep.mubr.f32.mxu0 0.0
    %2058 = vmatmul.mubr.f32.gmra.mrb[0].mxu0 %v1388
    %v2059 = vpop.f32.mrb[0].mxu0
    %v2060 = vadd.f32 %v1982, %v2059
    %v2061 = vpop.f32.mrb[0].mxu0
    %2062 = vmatprep.mubr.f32.mxu0 0.0
    %2063 = vmatmul.mubr.f32.gmra.mrb[0].mxu0 %v1487
    %v2064 = vpop.f32.mrb[0].mxu0
    %v2065 = vadd.f32 %v1982, %v2064
    %v2066 = vpop.f32.mrb[0].mxu0
    %2067 = vmatprep.mubr.f32.mxu0 0.0
    %2068 = vmatmul.mubr.f32.gmra.mrb[0].mxu0 %v1586
    %v2069 = vpop.f32.mrb[0].mxu0
    %v2070 = vadd.f32 %v1982, %v2069
    %v2071 = vpop.f32.mrb[0].mxu0
    %2072 = vmatprep.mubr.f32.mxu0 0.0
    %2073 = vmatmul.mubr.f32.gmra.mrb[0].mxu0 %v1685
    %v2074 = vpop.f32.mrb[0].mxu0
    %v2075 = vadd.f32 %v1982, %v2074
    %v2076 = vpop.f32.mrb[0].mxu0
    %2077 = vmatprep.mubr.f32.mxu0 0.0
    %2078 = vmatmul.mubr.f32.gmra.mrb[0].mxu0 %v1784
    %v2079 = vpop.f32.mrb[0].mxu0
    %v2080 = vadd.f32 %v1982, %v2079
    %v2081 = vpop.f32.mrb[0].mxu0
    %2082 = vmatprep.mubr.f32.mxu0 0.0
    %2083 = vmatmul.mubr.f32.gmra.mrb[0].mxu0 %v1883
    %v2084 = vpop.f32.mrb[0].mxu0
    %v2085 = vadd.f32 %v1982, %v2084
    %v2086 = vpop.f32.mrb[0].mxu0
    %2087 = vmatprep.mubr.f32.mxu0 0.0
    %2088 = vmatmul.mubr.f32.gmra.mrb[0].mxu0 %v1986
    %v2089 = vpop.f32.mrb[0].mxu0
    %v2090 = vadd.f32 %v1982, %v2089
    %v2091 = vpop.f32.mrb[0].mxu0
    %2092 = vdwg.mxu0
    %2093 = vst [vmem:[#allocation8] sm:$0xff] %v2055
    %2094 = vst [vmem:[#allocation8 + $0x8] sm:$0xff] %v2060
    %2095 = vst [vmem:[#allocation8 + $0x10] sm:$0xff] %v2065
    %2096 = vst [vmem:[#allocation8 + $0x18] sm:$0xff] %v2070
    %2097 = vst [vmem:[#allocation8 + $0x20] sm:$0xff] %v2075
    %2098 = vst [vmem:[#allocation8 + $0x28] sm:$0xff] %v2080
    %2099 = vst [vmem:[#allocation8 + $0x30] sm:$0xff] %v2085
    %2100 = vst [vmem:[#allocation8 + $0x38] sm:$0xff] %v2090
    // Predicated region
    $region30: #{tpu_custom_call.1} parent=1 // pred_check
      _
    $region31: #{tpu_custom_call.1} parent=1 // pred_check_branch
      %2102 = sbr.rel (0) target = $region33
    $region32: #{tpu_custom_call.1} parent=1 // pred_region
      %s2104 = ssub.s32 1024, 1024
      %2105 = vsyncadd [#allocation4], %s2104
      %s2106 = sshll.u32 [#allocation8], 4
      %s2107 = int_to_ptr.vmem [resolvable:$true] %s2106
      %2112 = dma.vmem_to_hbm [thread:$0]  %s2107, 1024, %s4, [#allocation4], 128, 128, 8
    $region33: #{tpu_custom_call.1} parent=1 // pred_fallthru
      _
    // Predicated region
    $region34: #{tpu_custom_call.1} parent=1 // pred_check
      _
    $region35: #{tpu_custom_call.1} parent=1 // pred_check_branch
      %2114 = sbr.rel (0) target = $region37
    $region36: #{tpu_custom_call.1} parent=1 // pred_region
      %2115 = dma.done [#allocation4], 1024
    $region37: #{tpu_custom_call.1} parent=1 // pred_fallthru
      _
    %2116 = vsyncpa [#allocation3], 1
    %2117 = vsyncpa [#allocation6], 1
    %2118 = vsyncpa [#allocation4], 1

</llo_original>
